<compile_context>
chip_gen: v7x
topology: tpu7x:2x2x1
jax: 0.10.0
libtpu: 0.0.40
codegen_flags: <defaults>
</compile_context>

<pallas_src>
import math
import functools

import jax
import jax.numpy as jnp
from jax.experimental import pallas as pl
from jax.experimental.pallas import tpu as pltpu

# ---------------- config (small, consistent with the module) ----------------
HIDDEN = 64
NUM_HEADS = 4
NUM_KV_HEADS = 4
HEAD_DIM = HIDDEN // NUM_HEADS          # 16
BATCH = 2
SEQ = 16
LAYER_IDX = 1
RMS_EPS = 1e-5
DTYPE = jnp.bfloat16                    # flash-attn path requires fp16/bf16 inputs

OP_SIZE = NUM_HEADS * HEAD_DIM + 2 * (NUM_KV_HEADS * HEAD_DIM)


def lambda_init_fn(depth):
    return 0.8 - 0.6 * math.exp(-0.3 * depth)


def _vmem_limit(block_bytes):
    # Double-buffered pipeline blocks + compiler scratch margin; floored at the
    # framework default scoped limit and capped below the v7x 64 MiB physical budget.
    return int(min(max(2 * block_bytes + (4 << 20), 16 << 20), 60 << 20))


# ---------------- Pallas kernel 1: Wqkv projection with fused q/k/v split ----------------
def _qkv_proj_kernel(x_ref, w_ref, b_ref, q_ref, k_ref, v_ref, acc_ref, *,
                     q_size, kv_size):
    kk = pl.program_id(1)

    @pl.when(kk == 0)
    def _init():
        acc_ref[...] = jnp.zeros_like(acc_ref)

    # bf16 operands straight to the MXU; fp32 accumulation only.
    acc_ref[...] += jnp.dot(x_ref[...], w_ref[...], preferred_element_type=jnp.float32)

    @pl.when(kk == pl.num_programs(1) - 1)
    def _finalize():
        acc = acc_ref[...] + b_ref[...].astype(jnp.float32)
        q_ref[...] = acc[:, :q_size].astype(q_ref.dtype)
        k_ref[...] = acc[:, q_size:q_size + kv_size].astype(k_ref.dtype)
        v_ref[...] = acc[:, q_size + kv_size:].astype(v_ref.dtype)


def qkv_proj(x, w, b, q_size, kv_size, *, tm=256, tk=512):
    # x: (M, K), w: (K, N), b: (N,)  ->  q (M, q_size), k (M, kv_size), v (M, kv_size)
    M, K = x.shape
    _, N = w.shape
    tm = min(tm, M)
    tk = min(tk, K)
    assert K % tk == 0
    grid_m = pl.cdiv(M, tm)
    Mp = grid_m * tm
    if Mp != M:
        x = jnp.pad(x, ((0, Mp - M), (0, 0)))

    block_bytes = (tm * tk + tk * N + N + tm * N) * 2 + tm * N * 4
    q, k_, v_ = pl.pallas_call(
        functools.partial(_qkv_proj_kernel, q_size=q_size, kv_size=kv_size),
        out_shape=(jax.ShapeDtypeStruct((Mp, q_size), x.dtype),
                   jax.ShapeDtypeStruct((Mp, kv_size), x.dtype),
                   jax.ShapeDtypeStruct((Mp, kv_size), x.dtype)),
        grid=(grid_m, K // tk),
        in_specs=[
            pl.BlockSpec((tm, tk), lambda i, kk: (i, kk)),
            pl.BlockSpec((tk, N), lambda i, kk: (kk, 0)),
            pl.BlockSpec((1, N), lambda i, kk: (0, 0)),
        ],
        out_specs=(
            pl.BlockSpec((tm, q_size), lambda i, kk: (i, 0)),
            pl.BlockSpec((tm, kv_size), lambda i, kk: (i, 0)),
            pl.BlockSpec((tm, kv_size), lambda i, kk: (i, 0)),
        ),
        scratch_shapes=[pltpu.VMEM((tm, N), jnp.float32)],
        compiler_params=pltpu.CompilerParams(
            dimension_semantics=("parallel", "arbitrary"),
            vmem_limit_bytes=_vmem_limit(block_bytes)),
    )(x, w, b.reshape(1, N))
    if Mp != M:
        q, k_, v_ = q[:M], k_[:M], v_[:M]
    return q, k_, v_


# ---------------- Pallas kernel 2: generic tiled Linear (out_proj) ----------------
def _linear_kernel(x_ref, w_ref, b_ref, o_ref, acc_ref):
    kk = pl.program_id(2)

    @pl.when(kk == 0)
    def _init():
        acc_ref[...] = jnp.zeros_like(acc_ref)

    acc_ref[...] += jnp.dot(x_ref[...], w_ref[...], preferred_element_type=jnp.float32)

    @pl.when(kk == pl.num_programs(2) - 1)
    def _finalize():
        o_ref[...] = (acc_ref[...] + b_ref[...].astype(jnp.float32)).astype(o_ref.dtype)


def linear(x, w, b, *, tm=256, tn=512, tk=512):
    # x: (M, K), w: (K, N), b: (N,) -> (M, N)    (w stored transposed vs. torch Linear)
    M, K = x.shape
    _, N = w.shape
    tm = min(tm, M)
    tn = min(tn, N)
    tk = min(tk, K)
    assert N % tn == 0 and K % tk == 0
    grid_m = pl.cdiv(M, tm)
    Mp = grid_m * tm
    if Mp != M:
        x = jnp.pad(x, ((0, Mp - M), (0, 0)))

    block_bytes = (tm * tk + tk * tn + tn + tm * tn) * 2 + tm * tn * 4
    out = pl.pallas_call(
        _linear_kernel,
        out_shape=jax.ShapeDtypeStruct((Mp, N), x.dtype),
        grid=(grid_m, N // tn, K // tk),
        in_specs=[
            pl.BlockSpec((tm, tk), lambda i, j, kk: (i, kk)),
            pl.BlockSpec((tk, tn), lambda i, j, kk: (kk, j)),
            pl.BlockSpec((1, tn), lambda i, j, kk: (0, j)),
        ],
        out_specs=pl.BlockSpec((tm, tn), lambda i, j, kk: (i, j)),
        scratch_shapes=[pltpu.VMEM((tm, tn), jnp.float32)],
        compiler_params=pltpu.CompilerParams(
            dimension_semantics=("parallel", "parallel", "arbitrary"),
            vmem_limit_bytes=_vmem_limit(block_bytes)),
    )(x, w, b.reshape(1, N))
    return out[:M] if Mp != M else out


# ---------------- Pallas kernel 3: fused differential flash attention ----------------
# One grid step handles one (batch, q-tile) pair with K/V for the whole batch element
# resident in VMEM.  A static loop over head pairs slices q/k/v pair columns directly
# out of the flat '(H two) D' hidden layout, runs BOTH softmax streams (sequenced)
# against the shared '(two D)' V concat with an in-kernel causal ki loop, and applies
#   attn = RMSNorm(attn1 - lambda_full*attn2) * (1 - lambda_init)
# on the fp32 accumulators before one full-width store into the (B, S, H*D) output.
def _diff_flash_kernel(lam_ref, q_ref, k_ref, v_ref, w_ref, o_ref, *,
                       scale, tq, tk, d, n_pairs, groups, lambda_init, eps):
    qi = pl.program_id(1)
    dd = 2 * d

    # Fold the softmax scale into q once per q tile (bf16 MXU LHS) instead of scaling
    # both fp32 score matrices every KV tile.
    q_all = q_ref[...] * scale                       # (tq, n_pairs*dd), stays bf16

    lam = lam_ref[0]                                 # fp32 scalar from SMEM
    out_scale = 1.0 - lambda_init

    # Causal mask for the (single) diagonal KV tile of this q tile; shared across all
    # head pairs and both streams.  Interior tiles never touch it.
    row = qi * tq + jax.lax.broadcasted_iota(jnp.int32, (tq, tk), 0)
    col = qi * tk + jax.lax.broadcasted_iota(jnp.int32, (tq, tk), 1)
    diag_mask = col <= row

    dn = (((1,), (1,)), ((), ()))                    # contract last dims -> q @ k^T

    outs = []
    for hp in range(n_pairs):                        # static loop over head pairs
        kc = (hp // groups) * dd                     # GQA: kv pair column offset
        qc = hp * dd
        q1 = q_all[:, qc:qc + d]                     # stream 1 (even original head)
        q2 = q_all[:, qc + d:qc + dd]                # stream 2 (odd original head)

        def stream_update(s, m, l, acc, v_t):
            m_new = jnp.maximum(m, s.max(axis=-1, keepdims=True))
            alpha = jnp.exp(m - m_new)
            p = jnp.exp(s - m_new)
            l_new = alpha * l + p.sum(axis=-1, keepdims=True)
            acc_new = alpha * acc + jnp.dot(p.astype(v_t.dtype), v_t,
                                            preferred_element_type=jnp.float32)
            return m_new, l_new, acc_new

        def tile(j, state, *, masked):
            m1, l1, acc1, m2, l2, acc2 = state
            rows = pl.ds(pl.multiple_of(j * tk, tk), tk)
            v_t = v_ref[rows, kc:kc + dd]            # '(two D)' concat, shared by both
            # stream 1 fully, then stream 2 (halves peak vreg liveness)
            s1 = jax.lax.dot_general(q1, k_ref[rows, kc:kc + d], dn,
                                     preferred_element_type=jnp.float32)
            if masked:
                s1 = jnp.where(diag_mask, s1, float("-inf"))
            m1, l1, acc1 = stream_update(s1, m1, l1, acc1, v_t)
            s2 = jax.lax.dot_general(q2, k_ref[rows, kc + d:kc + dd], dn,
                                     preferred_element_type=jnp.float32)
            if masked:
                s2 = jnp.where(diag_mask, s2, float("-inf"))
            m2, l2, acc2 = stream_update(s2, m2, l2, acc2, v_t)
            return m1, l1, acc1, m2, l2, acc2

        init = (jnp.full((tq, 1), -jnp.inf, jnp.float32),
                jnp.zeros((tq, 1), jnp.float32),
                jnp.zeros((tq, dd), jnp.float32),
                jnp.full((tq, 1), -jnp.inf, jnp.float32),
                jnp.zeros((tq, 1), jnp.float32),
                jnp.zeros((tq, dd), jnp.float32))

        # Interior KV tiles (strictly below the diagonal): unmasked fast path.  Tiles
        # above the diagonal are never touched at all (no DMA, no compute).
        state = jax.lax.fori_loop(0, qi, functools.partial(tile, masked=False), init)
        # Diagonal tile: the only one that needs the causal mask.  Every row has at
        # least one unmasked column, so m never stays -inf.
        m1, l1, acc1, m2, l2, acc2 = tile(qi, state, masked=True)

        # diff / RMSNorm epilogue on the fp32 accumulators
        o1 = acc1 * pl.reciprocal(l1, approx=True)
        o2 = acc2 * pl.reciprocal(l2, approx=True)
        a = o1 - lam * o2                            # attn1 - lambda_full*attn2
        var = jnp.mean(a * a, axis=-1, keepdims=True)   # SambaRMSNorm over 2*head_dim
        a = a * jax.lax.rsqrt(var + eps)
        a = a * w_ref[...] * out_scale
        outs.append(a.astype(o_ref.dtype))

    # One full-width store per grid step; 'H (two D)' -> '(H two) D' is the identity
    # on the flat layout, so this is already the out_proj input layout.
    o_ref[...] = jnp.concatenate(outs, axis=-1)


def fused_diff_attention(q, k, v, subln_w, lam, *, scale, lambda_init, tq=128):
    # q: (B, S, num_heads*head_dim), k/v: (B, S, num_kv_heads*head_dim)
    # subln_w: (2*head_dim,) fp32; lam: (1,) fp32 scalar.
    B, S, q_size = q.shape
    kv_size = k.shape[-1]
    d = HEAD_DIM
    dd = 2 * d
    n_pairs = q_size // dd
    n_kv_pairs = kv_size // dd
    groups = n_pairs // n_kv_pairs
    tq = min(tq, S)
    assert S % tq == 0, "sequence length must be a multiple of the q tile"
    tk = tq   # diagonal-only masking below assumes tk == tq
    # TODO(synk): on v6e/v7x (256-wide MXU) tk could be raised to 2*tq for large S
    #             now that the two streams are sequenced.

    kernel = functools.partial(
        _diff_flash_kernel, scale=scale, tq=tq, tk=tk, d=d, n_pairs=n_pairs,
        groups=groups, lambda_init=lambda_init, eps=RMS_EPS)

    block_bytes = (2 * tq * q_size * 2        # q tile + out tile (bf16)
                   + 2 * S * kv_size * 2      # batch-resident K + V (bf16)
                   + dd * 4)                  # subln weight (fp32)
    return pl.pallas_call(
        kernel,
        out_shape=jax.ShapeDtypeStruct((B, S, q_size), q.dtype),
        grid=(B, S // tq),
        in_specs=[
            pl.BlockSpec(memory_space=pltpu.MemorySpace.SMEM),           # lambda_full
            pl.BlockSpec((None, tq, q_size), lambda b, i: (b, i, 0)),    # q tile
            pl.BlockSpec((None, S, kv_size), lambda b, i: (b, 0, 0)),    # K (resident)
            pl.BlockSpec((None, S, kv_size), lambda b, i: (b, 0, 0)),    # V (resident)
            pl.BlockSpec((1, dd), lambda b, i: (0, 0)),                  # subln weight
        ],
        out_specs=pl.BlockSpec((None, tq, q_size), lambda b, i: (b, i, 0)),
        compiler_params=pltpu.CompilerParams(
            dimension_semantics=("parallel", "parallel"),
            vmem_limit_bytes=_vmem_limit(block_bytes)),
    )(lam, q, k, v, subln_w.reshape(1, dd))


# ---------------- full SambaAttention forward ----------------
def samba_attention_forward(hidden_states, params):
    B, S, H = hidden_states.shape
    assert H == HIDDEN
    q_size = NUM_HEADS * HEAD_DIM
    kv_size = NUM_KV_HEADS * HEAD_DIM

    # Wqkv projection; the kernel writes q/k/v as separate outputs (no XLA slicing),
    # and the reshapes below are free (row-major layout unchanged).
    q, k, v = qkv_proj(hidden_states.reshape(B * S, H),
                       params["wqkv_w"], params["wqkv_b"], q_size, kv_size)
    q = q.reshape(B, S, q_size)
    k = k.reshape(B, S, kv_size)
    v = v.reshape(B, S, kv_size)

    lambda_init = lambda_init_fn(LAYER_IDX)
    # lambda arithmetic entirely in fp32 (difference of exponentials)
    lambda_1 = jnp.exp(jnp.sum(params["lambda_q1"] * params["lambda_k1"]))
    lambda_2 = jnp.exp(jnp.sum(params["lambda_q2"] * params["lambda_k2"]))
    lambda_full = (lambda_1 - lambda_2 + lambda_init).astype(jnp.float32).reshape(1)

    scale = 1.0 / math.sqrt(HEAD_DIM)            # flash_attn default softmax scale
    attn = fused_diff_attention(q, k, v, params["subln_w"], lambda_full,
                                scale=scale, lambda_init=lambda_init)

    # attn is already laid out as (B, S, num_heads*head_dim) in '(H two) D' order.
    out = linear(attn.reshape(B * S, q_size),
                 params["out_proj_w"], params["out_proj_b"])
    return out.reshape(B, S, HIDDEN)


def init_params(key):
    ks = jax.random.split(key, 8)
    return {
        # stored as (in_features, out_features), i.e. transposed torch Linear weight
        "wqkv_w": (jax.random.normal(ks[0], (HIDDEN, OP_SIZE), jnp.float32) * 0.02).astype(DTYPE),
        "wqkv_b": (jax.random.normal(ks[1], (OP_SIZE,), jnp.float32) * 0.02).astype(DTYPE),
        "out_proj_w": (jax.random.normal(ks[2], (NUM_HEADS * HEAD_DIM, HIDDEN), jnp.float32) * 0.02).astype(DTYPE),
        "out_proj_b": (jax.random.normal(ks[3], (HIDDEN,), jnp.float32) * 0.02).astype(DTYPE),
        "lambda_q1": jax.random.normal(ks[4], (HEAD_DIM,), jnp.float32) * 0.1,
        "lambda_k1": jax.random.normal(ks[5], (HEAD_DIM,), jnp.float32) * 0.1,
        "lambda_q2": jax.random.normal(ks[6], (HEAD_DIM,), jnp.float32) * 0.1,
        "lambda_k2": jax.random.normal(ks[7], (HEAD_DIM,), jnp.float32) * 0.1,
        "subln_w": jnp.ones((2 * HEAD_DIM,), jnp.float32),
    }


if __name__ == "__main__":
    key = jax.random.PRNGKey(0)
    pkey, xkey = jax.random.split(key)
    params = init_params(pkey)
    hidden_states = jax.random.normal(xkey, (BATCH, SEQ, HIDDEN), jnp.float32).astype(DTYPE)

    out = jax.jit(samba_attention_forward)(hidden_states, params)
    out = jax.block_until_ready(out)

    assert out.shape == (BATCH, SEQ, HIDDEN)
    assert out.dtype == DTYPE
    assert bool(jnp.all(jnp.isfinite(out.astype(jnp.float32))))
    print("KERNEL_OK")
</pallas_src>

<mosaic_0001>
module attributes {stable_mosaic.version = 11 : i64} {
  func.func @_qkv_proj_kernel(%arg0: i32, %arg1: i32, %arg2: memref<32x64xbf16, #tpu.memory_space<vmem>>, %arg3: memref<64x192xbf16, #tpu.memory_space<vmem>>, %arg4: memref<1x192xbf16, #tpu.memory_space<vmem>>, %arg5: memref<32x64xbf16, #tpu.memory_space<vmem>>, %arg6: memref<32x64xbf16, #tpu.memory_space<vmem>>, %arg7: memref<32x64xbf16, #tpu.memory_space<vmem>>, %arg8: memref<32x192xf32, #tpu.memory_space<vmem>>) attributes {dimension_semantics = [#tpu.dimension_semantics<parallel>, #tpu.dimension_semantics<arbitrary>], iteration_bounds = array<i64: 1, 1>, scalar_prefetch = 0 : i64, scratch_operands = 1 : i64, tpu.core_type = #tpu.core_type<tc>, window_params = [{transform_indices = @transform_0, window_bounds = array<i64: 32, 64>}, {transform_indices = @transform_1, window_bounds = array<i64: 64, 192>}, {pipeline_mode = #tpu.pipeline_mode<synchronous>, transform_indices = @transform_2, window_bounds = array<i64: 1, 192>}, {transform_indices = @transform_3, window_bounds = array<i64: 32, 64>}, {transform_indices = @transform_4, window_bounds = array<i64: 32, 64>}, {transform_indices = @transform_5, window_bounds = array<i64: 32, 64>}]} {
    %c0_i32 = arith.constant 0 : i32
    %0 = arith.cmpi eq, %arg1, %c0_i32 : i32
    %1 = arith.extui %0 : i1 to i32
    %c0_i32_0 = arith.constant 0 : i32
    %2 = arith.cmpi ne, %1, %c0_i32_0 : i32
    scf.if %2 {
      %cst_10 = arith.constant 0.000000e+00 : f32
      %12 = vector.broadcast %cst_10 : f32 to vector<32x192xf32>
      %c0_11 = arith.constant 0 : index
      %c0_12 = arith.constant 0 : index
      %13 = vector.load %arg8[%c0_11, %c0_12] : memref<32x192xf32, #tpu.memory_space<vmem>>, vector<32x192xf32>
      tpu.vector_store %arg8[%c0_11, %c0_12], %12 {strides = array<i32>} : memref<32x192xf32, #tpu.memory_space<vmem>>, vector<32x192xf32>,
    } else {
    }
    %c0 = arith.constant 0 : index
    %c0_1 = arith.constant 0 : index
    %3 = vector.load %arg8[%c0, %c0_1] : memref<32x192xf32, #tpu.memory_space<vmem>>, vector<32x192xf32>
    %c0_2 = arith.constant 0 : index
    %c0_3 = arith.constant 0 : index
    %4 = vector.load %arg2[%c0_2, %c0_3] : memref<32x64xbf16, #tpu.memory_space<vmem>>, vector<32x64xbf16>
    %c0_4 = arith.constant 0 : index
    %c0_5 = arith.constant 0 : index
    %5 = vector.load %arg3[%c0_4, %c0_5] : memref<64x192xbf16, #tpu.memory_space<vmem>>, vector<64x192xbf16>
    %cst = arith.constant dense<0.000000e+00> : vector<32x192xf32>
    %6 = tpu.matmul %4, %5, %cst {dimension_numbers = #tpu.dot_dimension_numbers<[1], [0], [0], [1], [0, 0, 1, 1], [], []>} : vector<32x64xbf16>, vector<64x192xbf16>, vector<32x192xf32> -> vector<32x192xf32>
    %7 = arith.addf %3, %6 : vector<32x192xf32>
    %c0_6 = arith.constant 0 : index
    %c0_7 = arith.constant 0 : index
    %8 = vector.load %arg8[%c0_6, %c0_7] : memref<32x192xf32, #tpu.memory_space<vmem>>, vector<32x192xf32>
    tpu.vector_store %arg8[%c0_6, %c0_7], %7 {strides = array<i32>} : memref<32x192xf32, #tpu.memory_space<vmem>>, vector<32x192xf32>,
    %c0_i32_8 = arith.constant 0 : i32
    %9 = arith.cmpi eq, %arg1, %c0_i32_8 : i32
    %10 = arith.extui %9 : i1 to i32
    %c0_i32_9 = arith.constant 0 : i32
    %11 = arith.cmpi ne, %10, %c0_i32_9 : i32
    scf.if %11 {
      %c0_10 = arith.constant 0 : index
      %c0_11 = arith.constant 0 : index
      %12 = vector.load %arg8[%c0_10, %c0_11] : memref<32x192xf32, #tpu.memory_space<vmem>>, vector<32x192xf32>
      %c0_12 = arith.constant 0 : index
      %c0_13 = arith.constant 0 : index
      %13 = vector.load %arg4[%c0_12, %c0_13] : memref<1x192xbf16, #tpu.memory_space<vmem>>, vector<1x192xbf16>
      %14 = arith.extf %13 : vector<1x192xbf16> to vector<1x192xf32>
      %15 = vector.broadcast %14 : vector<1x192xf32> to vector<32x192xf32>
      %16 = arith.addf %12, %15 : vector<32x192xf32>
      %17 = vector.extract_strided_slice %16 {offsets = [0, 0], sizes = [32, 64], strides = [1, 1]} : vector<32x192xf32> to vector<32x64xf32>
      %18 = arith.truncf %17 : vector<32x64xf32> to vector<32x64xbf16>
      %c0_14 = arith.constant 0 : index
      %c0_15 = arith.constant 0 : index
      %19 = vector.load %arg5[%c0_14, %c0_15] : memref<32x64xbf16, #tpu.memory_space<vmem>>, vector<32x64xbf16>
      tpu.vector_store %arg5[%c0_14, %c0_15], %18 {strides = array<i32>} : memref<32x64xbf16, #tpu.memory_space<vmem>>, vector<32x64xbf16>,
      %20 = vector.extract_strided_slice %16 {offsets = [0, 64], sizes = [32, 64], strides = [1, 1]} : vector<32x192xf32> to vector<32x64xf32>
      %21 = arith.truncf %20 : vector<32x64xf32> to vector<32x64xbf16>
      %c0_16 = arith.constant 0 : index
      %c0_17 = arith.constant 0 : index
      %22 = vector.load %arg6[%c0_16, %c0_17] : memref<32x64xbf16, #tpu.memory_space<vmem>>, vector<32x64xbf16>
      tpu.vector_store %arg6[%c0_16, %c0_17], %21 {strides = array<i32>} : memref<32x64xbf16, #tpu.memory_space<vmem>>, vector<32x64xbf16>,
      %23 = vector.extract_strided_slice %16 {offsets = [0, 128], sizes = [32, 64], strides = [1, 1]} : vector<32x192xf32> to vector<32x64xf32>
      %24 = arith.truncf %23 : vector<32x64xf32> to vector<32x64xbf16>
      %c0_18 = arith.constant 0 : index
      %c0_19 = arith.constant 0 : index
      %25 = vector.load %arg7[%c0_18, %c0_19] : memref<32x64xbf16, #tpu.memory_space<vmem>>, vector<32x64xbf16>
      tpu.vector_store %arg7[%c0_18, %c0_19], %24 {strides = array<i32>} : memref<32x64xbf16, #tpu.memory_space<vmem>>, vector<32x64xbf16>,
    } else {
    }
    return
  }
  func.func @transform_0(%arg0: i32, %arg1: i32) -> (i32, i32) {
    %c0_i32 = arith.constant 0 : i32
    return %arg0, %arg1 : i32, i32
  }
  func.func @transform_1(%arg0: i32, %arg1: i32) -> (i32, i32) {
    %c0_i32 = arith.constant 0 : i32
    %c0_i32_0 = arith.constant 0 : i32
    return %arg1, %c0_i32 : i32, i32
  }
  func.func @transform_2(%arg0: i32, %arg1: i32) -> (i32, i32) {
    %c0_i32 = arith.constant 0 : i32
    %c0_i32_0 = arith.constant 0 : i32
    %c0_i32_1 = arith.constant 0 : i32
    return %c0_i32, %c0_i32_0 : i32, i32
  }
  func.func @transform_3(%arg0: i32, %arg1: i32) -> (i32, i32) {
    %c0_i32 = arith.constant 0 : i32
    %c0_i32_0 = arith.constant 0 : i32
    return %arg0, %c0_i32 : i32, i32
  }
  func.func @transform_4(%arg0: i32, %arg1: i32) -> (i32, i32) {
    %c0_i32 = arith.constant 0 : i32
    %c0_i32_0 = arith.constant 0 : i32
    return %arg0, %c0_i32 : i32, i32
  }
  func.func @transform_5(%arg0: i32, %arg1: i32) -> (i32, i32) {
    %c0_i32 = arith.constant 0 : i32
    %c0_i32_0 = arith.constant 0 : i32
    return %arg0, %c0_i32 : i32, i32
  }
}

module attributes {stable_mosaic.version = 11 : i64} {
  func.func @_diff_flash_kernel(%arg0: i32, %arg1: i32, %arg2: memref<1xf32, #tpu.memory_space<smem>>, %arg3: memref<1x16x64xbf16, #tpu.memory_space<vmem>>, %arg4: memref<1x16x64xbf16, #tpu.memory_space<vmem>>, %arg5: memref<1x16x64xbf16, #tpu.memory_space<vmem>>, %arg6: memref<1x32xf32, #tpu.memory_space<vmem>>, %arg7: memref<1x16x64xbf16, #tpu.memory_space<vmem>>) attributes {dimension_semantics = [#tpu.dimension_semantics<parallel>, #tpu.dimension_semantics<parallel>], iteration_bounds = array<i64: 2, 1>, scalar_prefetch = 0 : i64, scratch_operands = 0 : i64, tpu.core_type = #tpu.core_type<tc>, window_params = [{transform_indices = @transform_0, window_bounds = array<i64: 1>}, {transform_indices = @transform_1, window_bounds = array<i64: 1, 16, 64>}, {transform_indices = @transform_2, window_bounds = array<i64: 1, 16, 64>}, {transform_indices = @transform_3, window_bounds = array<i64: 1, 16, 64>}, {pipeline_mode = #tpu.pipeline_mode<synchronous>, transform_indices = @transform_4, window_bounds = array<i64: 1, 32>}, {transform_indices = @transform_5, window_bounds = array<i64: 1, 16, 64>}]} {
    %c0 = arith.constant 0 : index
    %c0_0 = arith.constant 0 : index
    %c0_1 = arith.constant 0 : index
    %0 = vector.load %arg3[%c0, %c0_0, %c0_1] : memref<1x16x64xbf16, #tpu.memory_space<vmem>>, vector<1x16x64xbf16>
    %1 = vector.shape_cast %0 : vector<1x16x64xbf16> to vector<16x64xbf16>
    %cst = arith.constant 2.500000e-01 : bf16
    %2 = vector.broadcast %cst : bf16 to vector<16x64xbf16>
    %3 = arith.mulf %1, %2 : vector<16x64xbf16>
    %c0_2 = arith.constant 0 : index
    %4 = memref.load %arg2[%c0_2] : memref<1xf32, #tpu.memory_space<smem>>
    %c16_i32 = arith.constant 16 : i32
    %5 = arith.muli %arg1, %c16_i32 : i32
    %6 = tpu.iota {dimensions = array<i32: 0>} : vector<16x16xi32>
    %7 = vector.broadcast %5 : i32 to vector<16x16xi32>
    %8 = arith.addi %7, %6 : vector<16x16xi32>
    %c16_i32_3 = arith.constant 16 : i32
    %9 = arith.muli %arg1, %c16_i32_3 : i32
    %10 = tpu.iota {dimensions = array<i32: 1>} : vector<16x16xi32>
    %11 = vector.broadcast %9 : i32 to vector<16x16xi32>
    %12 = arith.addi %11, %10 : vector<16x16xi32>
    %13 = arith.cmpi sle, %12, %8 : vector<16x16xi32>
    %14 = vector.extract_strided_slice %3 {offsets = [0, 0], sizes = [16, 16], strides = [1, 1]} : vector<16x64xbf16> to vector<16x16xbf16>
    %15 = vector.extract_strided_slice %3 {offsets = [0, 16], sizes = [16, 16], strides = [1, 1]} : vector<16x64xbf16> to vector<16x16xbf16>
    %cst_4 = arith.constant 0xFF800000 : f32
    %16 = vector.broadcast %cst_4 : f32 to vector<16x1xf32>
    %cst_5 = arith.constant 0.000000e+00 : f32
    %17 = vector.broadcast %cst_5 : f32 to vector<16x1xf32>
    %cst_6 = arith.constant 0.000000e+00 : f32
    %18 = vector.broadcast %cst_6 : f32 to vector<16x32xf32>
    %cst_7 = arith.constant 0xFF800000 : f32
    %19 = vector.broadcast %cst_7 : f32 to vector<16x1xf32>
    %cst_8 = arith.constant 0.000000e+00 : f32
    %20 = vector.broadcast %cst_8 : f32 to vector<16x1xf32>
    %cst_9 = arith.constant 0.000000e+00 : f32
    %21 = vector.broadcast %cst_9 : f32 to vector<16x32xf32>
    %c0_i32 = arith.constant 0 : i32
    %22 = arith.subi %arg1, %c0_i32 : i32
    %23 = arith.addi %c0_i32, %22 : i32
    %c1_i32 = arith.constant 1 : i32
    %24:6 = scf.for %arg8 = %c0_i32 to %23 step %c1_i32 iter_args(%arg9 = %16, %arg10 = %17, %arg11 = %18, %arg12 = %19, %arg13 = %20, %arg14 = %21) -> (vector<16x1xf32>, vector<16x1xf32>, vector<16x32xf32>, vector<16x1xf32>, vector<16x1xf32>, vector<16x32xf32>)  : i32 {
      %c16_i32_64 = arith.constant 16 : i32
      %192 = arith.muli %arg8, %c16_i32_64 : i32
      %193 = tpu.assume_multiple %192, 16 : i32
      %c0_65 = arith.constant 0 : index
      %194 = arith.index_cast %193 : i32 to index
      %c0_66 = arith.constant 0 : index
      %195 = vector.load %arg5[%c0_65, %194, %c0_66] : memref<1x16x64xbf16, #tpu.memory_space<vmem>>, vector<1x16x32xbf16>
      %196 = vector.shape_cast %195 : vector<1x16x32xbf16> to vector<16x32xbf16>
      %c0_67 = arith.constant 0 : index
      %197 = arith.index_cast %193 : i32 to index
      %c0_68 = arith.constant 0 : index
      %198 = vector.load %arg4[%c0_67, %197, %c0_68] : memref<1x16x64xbf16, #tpu.memory_space<vmem>>, vector<1x16x16xbf16>
      %199 = vector.shape_cast %198 : vector<1x16x16xbf16> to vector<16x16xbf16>
      %cst_69 = arith.constant dense<0.000000e+00> : vector<16x16xf32>
      %200 = tpu.matmul %14, %199, %cst_69 {dimension_numbers = #tpu.dot_dimension_numbers<[1], [1], [0], [0], [0, 0, 1, 0], [], []>} : vector<16x16xbf16>, vector<16x16xbf16>, vector<16x16xf32> -> vector<16x16xf32>
      %cst_70 = arith.constant dense<0xFF800000> : vector<16xf32>
      %201 = vector.multi_reduction <maximumf>, %200, %cst_70 [1] : vector<16x16xf32> to vector<16xf32>
      %202 = vector.shape_cast %201 : vector<16xf32> to vector<16x1xf32>
      %203 = arith.maximumf %arg9, %202 : vector<16x1xf32>
      %204 = arith.subf %arg9, %203 : vector<16x1xf32>
      %205 = math.exp %204 : vector<16x1xf32>
      %206 = vector.broadcast %203 : vector<16x1xf32> to vector<16x16xf32>
      %207 = arith.subf %200, %206 : vector<16x16xf32>
      %208 = math.exp %207 : vector<16x16xf32>
      %209 = arith.mulf %205, %arg10 : vector<16x1xf32>
      %cst_71 = arith.constant dense<0.000000e+00> : vector<16xf32>
      %210 = vector.multi_reduction <add>, %208, %cst_71 [1] : vector<16x16xf32> to vector<16xf32>
      %211 = vector.shape_cast %210 : vector<16xf32> to vector<16x1xf32>
      %212 = arith.addf %209, %211 : vector<16x1xf32>
      %213 = vector.broadcast %205 : vector<16x1xf32> to vector<16x32xf32>
      %214 = arith.mulf %213, %arg11 : vector<16x32xf32>
      %215 = arith.truncf %208 : vector<16x16xf32> to vector<16x16xbf16>
      %cst_72 = arith.constant dense<0.000000e+00> : vector<16x32xf32>
      %216 = tpu.matmul %215, %196, %cst_72 {dimension_numbers = #tpu.dot_dimension_numbers<[1], [0], [0], [1], [0, 0, 1, 1], [], []>} : vector<16x16xbf16>, vector<16x32xbf16>, vector<16x32xf32> -> vector<16x32xf32>
      %217 = arith.addf %214, %216 : vector<16x32xf32>
      %c0_73 = arith.constant 0 : index
      %218 = arith.index_cast %193 : i32 to index
      %c16_74 = arith.constant 16 : index
      %219 = vector.load %arg4[%c0_73, %218, %c16_74] : memref<1x16x64xbf16, #tpu.memory_space<vmem>>, vector<1x16x16xbf16>
      %220 = vector.shape_cast %219 : vector<1x16x16xbf16> to vector<16x16xbf16>
      %cst_75 = arith.constant dense<0.000000e+00> : vector<16x16xf32>
      %221 = tpu.matmul %15, %220, %cst_75 {dimension_numbers = #tpu.dot_dimension_numbers<[1], [1], [0], [0], [0, 0, 1, 0], [], []>} : vector<16x16xbf16>, vector<16x16xbf16>, vector<16x16xf32> -> vector<16x16xf32>
      %cst_76 = arith.constant dense<0xFF800000> : vector<16xf32>
      %222 = vector.multi_reduction <maximumf>, %221, %cst_76 [1] : vector<16x16xf32> to vector<16xf32>
      %223 = vector.shape_cast %222 : vector<16xf32> to vector<16x1xf32>
      %224 = arith.maximumf %arg12, %223 : vector<16x1xf32>
      %225 = arith.subf %arg12, %224 : vector<16x1xf32>
      %226 = math.exp %225 : vector<16x1xf32>
      %227 = vector.broadcast %224 : vector<16x1xf32> to vector<16x16xf32>
      %228 = arith.subf %221, %227 : vector<16x16xf32>
      %229 = math.exp %228 : vector<16x16xf32>
      %230 = arith.mulf %226, %arg13 : vector<16x1xf32>
      %cst_77 = arith.constant dense<0.000000e+00> : vector<16xf32>
      %231 = vector.multi_reduction <add>, %229, %cst_77 [1] : vector<16x16xf32> to vector<16xf32>
      %232 = vector.shape_cast %231 : vector<16xf32> to vector<16x1xf32>
      %233 = arith.addf %230, %232 : vector<16x1xf32>
      %234 = vector.broadcast %226 : vector<16x1xf32> to vector<16x32xf32>
      %235 = arith.mulf %234, %arg14 : vector<16x32xf32>
      %236 = arith.truncf %229 : vector<16x16xf32> to vector<16x16xbf16>
      %cst_78 = arith.constant dense<0.000000e+00> : vector<16x32xf32>
      %237 = tpu.matmul %236, %196, %cst_78 {dimension_numbers = #tpu.dot_dimension_numbers<[1], [0], [0], [1], [0, 0, 1, 1], [], []>} : vector<16x16xbf16>, vector<16x32xbf16>, vector<16x32xf32> -> vector<16x32xf32>
      %238 = arith.addf %235, %237 : vector<16x32xf32>
      scf.yield %203, %212, %217, %224, %233, %238 : vector<16x1xf32>, vector<16x1xf32>, vector<16x32xf32>, vector<16x1xf32>, vector<16x1xf32>, vector<16x32xf32>
    }
    %c16_i32_10 = arith.constant 16 : i32
    %25 = arith.muli %arg1, %c16_i32_10 : i32
    %26 = tpu.assume_multiple %25, 16 : i32
    %c0_11 = arith.constant 0 : index
    %27 = arith.index_cast %26 : i32 to index
    %c0_12 = arith.constant 0 : index
    %28 = vector.load %arg5[%c0_11, %27, %c0_12] : memref<1x16x64xbf16, #tpu.memory_space<vmem>>, vector<1x16x32xbf16>
    %29 = vector.shape_cast %28 : vector<1x16x32xbf16> to vector<16x32xbf16>
    %c0_13 = arith.constant 0 : index
    %30 = arith.index_cast %26 : i32 to index
    %c0_14 = arith.constant 0 : index
    %31 = vector.load %arg4[%c0_13, %30, %c0_14] : memref<1x16x64xbf16, #tpu.memory_space<vmem>>, vector<1x16x16xbf16>
    %32 = vector.shape_cast %31 : vector<1x16x16xbf16> to vector<16x16xbf16>
    %cst_15 = arith.constant dense<0.000000e+00> : vector<16x16xf32>
    %33 = tpu.matmul %14, %32, %cst_15 {dimension_numbers = #tpu.dot_dimension_numbers<[1], [1], [0], [0], [0, 0, 1, 0], [], []>} : vector<16x16xbf16>, vector<16x16xbf16>, vector<16x16xf32> -> vector<16x16xf32>
    %cst_16 = arith.constant 0xFF800000 : f32
    %34 = vector.broadcast %cst_16 : f32 to vector<16x16xf32>
    %35 = arith.select %13, %33, %34 : vector<16x16xi1>, vector<16x16xf32>
    %cst_17 = arith.constant dense<0xFF800000> : vector<16xf32>
    %36 = vector.multi_reduction <maximumf>, %35, %cst_17 [1] : vector<16x16xf32> to vector<16xf32>
    %37 = vector.shape_cast %36 : vector<16xf32> to vector<16x1xf32>
    %38 = arith.maximumf %24#0, %37 : vector<16x1xf32>
    %39 = arith.subf %24#0, %38 : vector<16x1xf32>
    %40 = math.exp %39 : vector<16x1xf32>
    %41 = vector.broadcast %38 : vector<16x1xf32> to vector<16x16xf32>
    %42 = arith.subf %35, %41 : vector<16x16xf32>
    %43 = math.exp %42 : vector<16x16xf32>
    %44 = arith.mulf %40, %24#1 : vector<16x1xf32>
    %cst_18 = arith.constant dense<0.000000e+00> : vector<16xf32>
    %45 = vector.multi_reduction <add>, %43, %cst_18 [1] : vector<16x16xf32> to vector<16xf32>
    %46 = vector.shape_cast %45 : vector<16xf32> to vector<16x1xf32>
    %47 = arith.addf %44, %46 : vector<16x1xf32>
    %48 = vector.broadcast %40 : vector<16x1xf32> to vector<16x32xf32>
    %49 = arith.mulf %48, %24#2 : vector<16x32xf32>
    %50 = arith.truncf %43 : vector<16x16xf32> to vector<16x16xbf16>
    %cst_19 = arith.constant dense<0.000000e+00> : vector<16x32xf32>
    %51 = tpu.matmul %50, %29, %cst_19 {dimension_numbers = #tpu.dot_dimension_numbers<[1], [0], [0], [1], [0, 0, 1, 1], [], []>} : vector<16x16xbf16>, vector<16x32xbf16>, vector<16x32xf32> -> vector<16x32xf32>
    %52 = arith.addf %49, %51 : vector<16x32xf32>
    %c0_20 = arith.constant 0 : index
    %53 = arith.index_cast %26 : i32 to index
    %c16 = arith.constant 16 : index
    %54 = vector.load %arg4[%c0_20, %53, %c16] : memref<1x16x64xbf16, #tpu.memory_space<vmem>>, vector<1x16x16xbf16>
    %55 = vector.shape_cast %54 : vector<1x16x16xbf16> to vector<16x16xbf16>
    %cst_21 = arith.constant dense<0.000000e+00> : vector<16x16xf32>
    %56 = tpu.matmul %15, %55, %cst_21 {dimension_numbers = #tpu.dot_dimension_numbers<[1], [1], [0], [0], [0, 0, 1, 0], [], []>} : vector<16x16xbf16>, vector<16x16xbf16>, vector<16x16xf32> -> vector<16x16xf32>
    %cst_22 = arith.constant 0xFF800000 : f32
    %57 = vector.broadcast %cst_22 : f32 to vector<16x16xf32>
    %58 = arith.select %13, %56, %57 : vector<16x16xi1>, vector<16x16xf32>
    %cst_23 = arith.constant dense<0xFF800000> : vector<16xf32>
    %59 = vector.multi_reduction <maximumf>, %58, %cst_23 [1] : vector<16x16xf32> to vector<16xf32>
    %60 = vector.shape_cast %59 : vector<16xf32> to vector<16x1xf32>
    %61 = arith.maximumf %24#3, %60 : vector<16x1xf32>
    %62 = arith.subf %24#3, %61 : vector<16x1xf32>
    %63 = math.exp %62 : vector<16x1xf32>
    %64 = vector.broadcast %61 : vector<16x1xf32> to vector<16x16xf32>
    %65 = arith.subf %58, %64 : vector<16x16xf32>
    %66 = math.exp %65 : vector<16x16xf32>
    %67 = arith.mulf %63, %24#4 : vector<16x1xf32>
    %cst_24 = arith.constant dense<0.000000e+00> : vector<16xf32>
    %68 = vector.multi_reduction <add>, %66, %cst_24 [1] : vector<16x16xf32> to vector<16xf32>
    %69 = vector.shape_cast %68 : vector<16xf32> to vector<16x1xf32>
    %70 = arith.addf %67, %69 : vector<16x1xf32>
    %71 = vector.broadcast %63 : vector<16x1xf32> to vector<16x32xf32>
    %72 = arith.mulf %71, %24#5 : vector<16x32xf32>
    %73 = arith.truncf %66 : vector<16x16xf32> to vector<16x16xbf16>
    %cst_25 = arith.constant dense<0.000000e+00> : vector<16x32xf32>
    %74 = tpu.matmul %73, %29, %cst_25 {dimension_numbers = #tpu.dot_dimension_numbers<[1], [0], [0], [1], [0, 0, 1, 1], [], []>} : vector<16x16xbf16>, vector<16x32xbf16>, vector<16x32xf32> -> vector<16x32xf32>
    %75 = arith.addf %72, %74 : vector<16x32xf32>
    %76 = tpu.reciprocal %47 {approx = true} : vector<16x1xf32> -> vector<16x1xf32>
    %77 = vector.broadcast %76 : vector<16x1xf32> to vector<16x32xf32>
    %78 = arith.mulf %52, %77 : vector<16x32xf32>
    %79 = tpu.reciprocal %70 {approx = true} : vector<16x1xf32> -> vector<16x1xf32>
    %80 = vector.broadcast %79 : vector<16x1xf32> to vector<16x32xf32>
    %81 = arith.mulf %75, %80 : vector<16x32xf32>
    %82 = vector.broadcast %4 : f32 to vector<16x32xf32>
    %83 = arith.mulf %82, %81 : vector<16x32xf32>
    %84 = arith.subf %78, %83 : vector<16x32xf32>
    %85 = arith.mulf %84, %84 : vector<16x32xf32>
    %cst_26 = arith.constant dense<0.000000e+00> : vector<16xf32>
    %86 = vector.multi_reduction <add>, %85, %cst_26 [1] : vector<16x32xf32> to vector<16xf32>
    %87 = vector.shape_cast %86 : vector<16xf32> to vector<16x1xf32>
    %cst_27 = arith.constant 3.200000e+01 : f32
    %88 = vector.broadcast %cst_27 : f32 to vector<16x1xf32>
    %89 = arith.divf %87, %88 : vector<16x1xf32>
    %cst_28 = arith.constant 9.99999974E-6 : f32
    %90 = vector.broadcast %cst_28 : f32 to vector<16x1xf32>
    %91 = arith.addf %89, %90 : vector<16x1xf32>
    %92 = math.rsqrt %91 : vector<16x1xf32>
    %93 = vector.broadcast %92 : vector<16x1xf32> to vector<16x32xf32>
    %94 = arith.mulf %84, %93 : vector<16x32xf32>
    %c0_29 = arith.constant 0 : index
    %c0_30 = arith.constant 0 : index
    %95 = vector.load %arg6[%c0_29, %c0_30] : memref<1x32xf32, #tpu.memory_space<vmem>>, vector<1x32xf32>
    %96 = vector.broadcast %95 : vector<1x32xf32> to vector<16x32xf32>
    %97 = arith.mulf %94, %96 : vector<16x32xf32>
    %cst_31 = arith.constant 0.644490957 : f32
    %98 = vector.broadcast %cst_31 : f32 to vector<16x32xf32>
    %99 = arith.mulf %97, %98 : vector<16x32xf32>
    %100 = arith.truncf %99 : vector<16x32xf32> to vector<16x32xbf16>
    %101 = vector.extract_strided_slice %3 {offsets = [0, 32], sizes = [16, 16], strides = [1, 1]} : vector<16x64xbf16> to vector<16x16xbf16>
    %102 = vector.extract_strided_slice %3 {offsets = [0, 48], sizes = [16, 16], strides = [1, 1]} : vector<16x64xbf16> to vector<16x16xbf16>
    %cst_32 = arith.constant 0xFF800000 : f32
    %103 = vector.broadcast %cst_32 : f32 to vector<16x1xf32>
    %cst_33 = arith.constant 0.000000e+00 : f32
    %104 = vector.broadcast %cst_33 : f32 to vector<16x1xf32>
    %cst_34 = arith.constant 0.000000e+00 : f32
    %105 = vector.broadcast %cst_34 : f32 to vector<16x32xf32>
    %cst_35 = arith.constant 0xFF800000 : f32
    %106 = vector.broadcast %cst_35 : f32 to vector<16x1xf32>
    %cst_36 = arith.constant 0.000000e+00 : f32
    %107 = vector.broadcast %cst_36 : f32 to vector<16x1xf32>
    %cst_37 = arith.constant 0.000000e+00 : f32
    %108 = vector.broadcast %cst_37 : f32 to vector<16x32xf32>
    %c0_i32_38 = arith.constant 0 : i32
    %109 = arith.subi %arg1, %c0_i32_38 : i32
    %110 = arith.addi %c0_i32_38, %109 : i32
    %c1_i32_39 = arith.constant 1 : i32
    %111:6 = scf.for %arg8 = %c0_i32_38 to %110 step %c1_i32_39 iter_args(%arg9 = %103, %arg10 = %104, %arg11 = %105, %arg12 = %106, %arg13 = %107, %arg14 = %108) -> (vector<16x1xf32>, vector<16x1xf32>, vector<16x32xf32>, vector<16x1xf32>, vector<16x1xf32>, vector<16x32xf32>)  : i32 {
      %c16_i32_64 = arith.constant 16 : i32
      %192 = arith.muli %arg8, %c16_i32_64 : i32
      %193 = tpu.assume_multiple %192, 16 : i32
      %c0_65 = arith.constant 0 : index
      %194 = arith.index_cast %193 : i32 to index
      %c32_66 = arith.constant 32 : index
      %195 = vector.load %arg5[%c0_65, %194, %c32_66] : memref<1x16x64xbf16, #tpu.memory_space<vmem>>, vector<1x16x32xbf16>
      %196 = vector.shape_cast %195 : vector<1x16x32xbf16> to vector<16x32xbf16>
      %c0_67 = arith.constant 0 : index
      %197 = arith.index_cast %193 : i32 to index
      %c32_68 = arith.constant 32 : index
      %198 = vector.load %arg4[%c0_67, %197, %c32_68] : memref<1x16x64xbf16, #tpu.memory_space<vmem>>, vector<1x16x16xbf16>
      %199 = vector.shape_cast %198 : vector<1x16x16xbf16> to vector<16x16xbf16>
      %cst_69 = arith.constant dense<0.000000e+00> : vector<16x16xf32>
      %200 = tpu.matmul %101, %199, %cst_69 {dimension_numbers = #tpu.dot_dimension_numbers<[1], [1], [0], [0], [0, 0, 1, 0], [], []>} : vector<16x16xbf16>, vector<16x16xbf16>, vector<16x16xf32> -> vector<16x16xf32>
      %cst_70 = arith.constant dense<0xFF800000> : vector<16xf32>
      %201 = vector.multi_reduction <maximumf>, %200, %cst_70 [1] : vector<16x16xf32> to vector<16xf32>
      %202 = vector.shape_cast %201 : vector<16xf32> to vector<16x1xf32>
      %203 = arith.maximumf %arg9, %202 : vector<16x1xf32>
      %204 = arith.subf %arg9, %203 : vector<16x1xf32>
      %205 = math.exp %204 : vector<16x1xf32>
      %206 = vector.broadcast %203 : vector<16x1xf32> to vector<16x16xf32>
      %207 = arith.subf %200, %206 : vector<16x16xf32>
      %208 = math.exp %207 : vector<16x16xf32>
      %209 = arith.mulf %205, %arg10 : vector<16x1xf32>
      %cst_71 = arith.constant dense<0.000000e+00> : vector<16xf32>
      %210 = vector.multi_reduction <add>, %208, %cst_71 [1] : vector<16x16xf32> to vector<16xf32>
      %211 = vector.shape_cast %210 : vector<16xf32> to vector<16x1xf32>
      %212 = arith.addf %209, %211 : vector<16x1xf32>
      %213 = vector.broadcast %205 : vector<16x1xf32> to vector<16x32xf32>
      %214 = arith.mulf %213, %arg11 : vector<16x32xf32>
      %215 = arith.truncf %208 : vector<16x16xf32> to vector<16x16xbf16>
      %cst_72 = arith.constant dense<0.000000e+00> : vector<16x32xf32>
      %216 = tpu.matmul %215, %196, %cst_72 {dimension_numbers = #tpu.dot_dimension_numbers<[1], [0], [0], [1], [0, 0, 1, 1], [], []>} : vector<16x16xbf16>, vector<16x32xbf16>, vector<16x32xf32> -> vector<16x32xf32>
      %217 = arith.addf %214, %216 : vector<16x32xf32>
      %c0_73 = arith.constant 0 : index
      %218 = arith.index_cast %193 : i32 to index
      %c48_74 = arith.constant 48 : index
      %219 = vector.load %arg4[%c0_73, %218, %c48_74] : memref<1x16x64xbf16, #tpu.memory_space<vmem>>, vector<1x16x16xbf16>
      %220 = vector.shape_cast %219 : vector<1x16x16xbf16> to vector<16x16xbf16>
      %cst_75 = arith.constant dense<0.000000e+00> : vector<16x16xf32>
      %221 = tpu.matmul %102, %220, %cst_75 {dimension_numbers = #tpu.dot_dimension_numbers<[1], [1], [0], [0], [0, 0, 1, 0], [], []>} : vector<16x16xbf16>, vector<16x16xbf16>, vector<16x16xf32> -> vector<16x16xf32>
      %cst_76 = arith.constant dense<0xFF800000> : vector<16xf32>
      %222 = vector.multi_reduction <maximumf>, %221, %cst_76 [1] : vector<16x16xf32> to vector<16xf32>
      %223 = vector.shape_cast %222 : vector<16xf32> to vector<16x1xf32>
      %224 = arith.maximumf %arg12, %223 : vector<16x1xf32>
      %225 = arith.subf %arg12, %224 : vector<16x1xf32>
      %226 = math.exp %225 : vector<16x1xf32>
      %227 = vector.broadcast %224 : vector<16x1xf32> to vector<16x16xf32>
      %228 = arith.subf %221, %227 : vector<16x16xf32>
      %229 = math.exp %228 : vector<16x16xf32>
      %230 = arith.mulf %226, %arg13 : vector<16x1xf32>
      %cst_77 = arith.constant dense<0.000000e+00> : vector<16xf32>
      %231 = vector.multi_reduction <add>, %229, %cst_77 [1] : vector<16x16xf32> to vector<16xf32>
      %232 = vector.shape_cast %231 : vector<16xf32> to vector<16x1xf32>
      %233 = arith.addf %230, %232 : vector<16x1xf32>
      %234 = vector.broadcast %226 : vector<16x1xf32> to vector<16x32xf32>
      %235 = arith.mulf %234, %arg14 : vector<16x32xf32>
      %236 = arith.truncf %229 : vector<16x16xf32> to vector<16x16xbf16>
      %cst_78 = arith.constant dense<0.000000e+00> : vector<16x32xf32>
      %237 = tpu.matmul %236, %196, %cst_78 {dimension_numbers = #tpu.dot_dimension_numbers<[1], [0], [0], [1], [0, 0, 1, 1], [], []>} : vector<16x16xbf16>, vector<16x32xbf16>, vector<16x32xf32> -> vector<16x32xf32>
      %238 = arith.addf %235, %237 : vector<16x32xf32>
      scf.yield %203, %212, %217, %224, %233, %238 : vector<16x1xf32>, vector<16x1xf32>, vector<16x32xf32>, vector<16x1xf32>, vector<16x1xf32>, vector<16x32xf32>
    }
    %c16_i32_40 = arith.constant 16 : i32
    %112 = arith.muli %arg1, %c16_i32_40 : i32
    %113 = tpu.assume_multiple %112, 16 : i32
    %c0_41 = arith.constant 0 : index
    %114 = arith.index_cast %113 : i32 to index
    %c32 = arith.constant 32 : index
    %115 = vector.load %arg5[%c0_41, %114, %c32] : memref<1x16x64xbf16, #tpu.memory_space<vmem>>, vector<1x16x32xbf16>
    %116 = vector.shape_cast %115 : vector<1x16x32xbf16> to vector<16x32xbf16>
    %c0_42 = arith.constant 0 : index
    %117 = arith.index_cast %113 : i32 to index
    %c32_43 = arith.constant 32 : index
    %118 = vector.load %arg4[%c0_42, %117, %c32_43] : memref<1x16x64xbf16, #tpu.memory_space<vmem>>, vector<1x16x16xbf16>
    %119 = vector.shape_cast %118 : vector<1x16x16xbf16> to vector<16x16xbf16>
    %cst_44 = arith.constant dense<0.000000e+00> : vector<16x16xf32>
    %120 = tpu.matmul %101, %119, %cst_44 {dimension_numbers = #tpu.dot_dimension_numbers<[1], [1], [0], [0], [0, 0, 1, 0], [], []>} : vector<16x16xbf16>, vector<16x16xbf16>, vector<16x16xf32> -> vector<16x16xf32>
    %cst_45 = arith.constant 0xFF800000 : f32
    %121 = vector.broadcast %cst_45 : f32 to vector<16x16xf32>
    %122 = arith.select %13, %120, %121 : vector<16x16xi1>, vector<16x16xf32>
    %cst_46 = arith.constant dense<0xFF800000> : vector<16xf32>
    %123 = vector.multi_reduction <maximumf>, %122, %cst_46 [1] : vector<16x16xf32> to vector<16xf32>
    %124 = vector.shape_cast %123 : vector<16xf32> to vector<16x1xf32>
    %125 = arith.maximumf %111#0, %124 : vector<16x1xf32>
    %126 = arith.subf %111#0, %125 : vector<16x1xf32>
    %127 = math.exp %126 : vector<16x1xf32>
    %128 = vector.broadcast %125 : vector<16x1xf32> to vector<16x16xf32>
    %129 = arith.subf %122, %128 : vector<16x16xf32>
    %130 = math.exp %129 : vector<16x16xf32>
    %131 = arith.mulf %127, %111#1 : vector<16x1xf32>
    %cst_47 = arith.constant dense<0.000000e+00> : vector<16xf32>
    %132 = vector.multi_reduction <add>, %130, %cst_47 [1] : vector<16x16xf32> to vector<16xf32>
    %133 = vector.shape_cast %132 : vector<16xf32> to vector<16x1xf32>
    %134 = arith.addf %131, %133 : vector<16x1xf32>
    %135 = vector.broadcast %127 : vector<16x1xf32> to vector<16x32xf32>
    %136 = arith.mulf %135, %111#2 : vector<16x32xf32>
    %137 = arith.truncf %130 : vector<16x16xf32> to vector<16x16xbf16>
    %cst_48 = arith.constant dense<0.000000e+00> : vector<16x32xf32>
    %138 = tpu.matmul %137, %116, %cst_48 {dimension_numbers = #tpu.dot_dimension_numbers<[1], [0], [0], [1], [0, 0, 1, 1], [], []>} : vector<16x16xbf16>, vector<16x32xbf16>, vector<16x32xf32> -> vector<16x32xf32>
    %139 = arith.addf %136, %138 : vector<16x32xf32>
    %c0_49 = arith.constant 0 : index
    %140 = arith.index_cast %113 : i32 to index
    %c48 = arith.constant 48 : index
    %141 = vector.load %arg4[%c0_49, %140, %c48] : memref<1x16x64xbf16, #tpu.memory_space<vmem>>, vector<1x16x16xbf16>
    %142 = vector.shape_cast %141 : vector<1x16x16xbf16> to vector<16x16xbf16>
    %cst_50 = arith.constant dense<0.000000e+00> : vector<16x16xf32>
    %143 = tpu.matmul %102, %142, %cst_50 {dimension_numbers = #tpu.dot_dimension_numbers<[1], [1], [0], [0], [0, 0, 1, 0], [], []>} : vector<16x16xbf16>, vector<16x16xbf16>, vector<16x16xf32> -> vector<16x16xf32>
    %cst_51 = arith.constant 0xFF800000 : f32
    %144 = vector.broadcast %cst_51 : f32 to vector<16x16xf32>
    %145 = arith.select %13, %143, %144 : vector<16x16xi1>, vector<16x16xf32>
    %cst_52 = arith.constant dense<0xFF800000> : vector<16xf32>
    %146 = vector.multi_reduction <maximumf>, %145, %cst_52 [1] : vector<16x16xf32> to vector<16xf32>
    %147 = vector.shape_cast %146 : vector<16xf32> to vector<16x1xf32>
    %148 = arith.maximumf %111#3, %147 : vector<16x1xf32>
    %149 = arith.subf %111#3, %148 : vector<16x1xf32>
    %150 = math.exp %149 : vector<16x1xf32>
    %151 = vector.broadcast %148 : vector<16x1xf32> to vector<16x16xf32>
    %152 = arith.subf %145, %151 : vector<16x16xf32>
    %153 = math.exp %152 : vector<16x16xf32>
    %154 = arith.mulf %150, %111#4 : vector<16x1xf32>
    %cst_53 = arith.constant dense<0.000000e+00> : vector<16xf32>
    %155 = vector.multi_reduction <add>, %153, %cst_53 [1] : vector<16x16xf32> to vector<16xf32>
    %156 = vector.shape_cast %155 : vector<16xf32> to vector<16x1xf32>
    %157 = arith.addf %154, %156 : vector<16x1xf32>
    %158 = vector.broadcast %150 : vector<16x1xf32> to vector<16x32xf32>
    %159 = arith.mulf %158, %111#5 : vector<16x32xf32>
    %160 = arith.truncf %153 : vector<16x16xf32> to vector<16x16xbf16>
    %cst_54 = arith.constant dense<0.000000e+00> : vector<16x32xf32>
    %161 = tpu.matmul %160, %116, %cst_54 {dimension_numbers = #tpu.dot_dimension_numbers<[1], [0], [0], [1], [0, 0, 1, 1], [], []>} : vector<16x16xbf16>, vector<16x32xbf16>, vector<16x32xf32> -> vector<16x32xf32>
    %162 = arith.addf %159, %161 : vector<16x32xf32>
    %163 = tpu.reciprocal %134 {approx = true} : vector<16x1xf32> -> vector<16x1xf32>
    %164 = vector.broadcast %163 : vector<16x1xf32> to vector<16x32xf32>
    %165 = arith.mulf %139, %164 : vector<16x32xf32>
    %166 = tpu.reciprocal %157 {approx = true} : vector<16x1xf32> -> vector<16x1xf32>
    %167 = vector.broadcast %166 : vector<16x1xf32> to vector<16x32xf32>
    %168 = arith.mulf %162, %167 : vector<16x32xf32>
    %169 = vector.broadcast %4 : f32 to vector<16x32xf32>
    %170 = arith.mulf %169, %168 : vector<16x32xf32>
    %171 = arith.subf %165, %170 : vector<16x32xf32>
    %172 = arith.mulf %171, %171 : vector<16x32xf32>
    %cst_55 = arith.constant dense<0.000000e+00> : vector<16xf32>
    %173 = vector.multi_reduction <add>, %172, %cst_55 [1] : vector<16x32xf32> to vector<16xf32>
    %174 = vector.shape_cast %173 : vector<16xf32> to vector<16x1xf32>
    %cst_56 = arith.constant 3.200000e+01 : f32
    %175 = vector.broadcast %cst_56 : f32 to vector<16x1xf32>
    %176 = arith.divf %174, %175 : vector<16x1xf32>
    %cst_57 = arith.constant 9.99999974E-6 : f32
    %177 = vector.broadcast %cst_57 : f32 to vector<16x1xf32>
    %178 = arith.addf %176, %177 : vector<16x1xf32>
    %179 = math.rsqrt %178 : vector<16x1xf32>
    %180 = vector.broadcast %179 : vector<16x1xf32> to vector<16x32xf32>
    %181 = arith.mulf %171, %180 : vector<16x32xf32>
    %c0_58 = arith.constant 0 : index
    %c0_59 = arith.constant 0 : index
    %182 = vector.load %arg6[%c0_58, %c0_59] : memref<1x32xf32, #tpu.memory_space<vmem>>, vector<1x32xf32>
    %183 = vector.broadcast %182 : vector<1x32xf32> to vector<16x32xf32>
    %184 = arith.mulf %181, %183 : vector<16x32xf32>
    %cst_60 = arith.constant 0.644490957 : f32
    %185 = vector.broadcast %cst_60 : f32 to vector<16x32xf32>
    %186 = arith.mulf %184, %185 : vector<16x32xf32>
    %187 = arith.truncf %186 : vector<16x32xf32> to vector<16x32xbf16>
    %188 = tpu.concatenate %100, %187 in 1 : vector<16x32xbf16>, vector<16x32xbf16> -> vector<16x64xbf16>
    %c0_61 = arith.constant 0 : index
    %c0_62 = arith.constant 0 : index
    %c0_63 = arith.constant 0 : index
    %189 = vector.load %arg7[%c0_61, %c0_62, %c0_63] : memref<1x16x64xbf16, #tpu.memory_space<vmem>>, vector<1x16x64xbf16>
    %190 = vector.shape_cast %189 : vector<1x16x64xbf16> to vector<16x64xbf16>
    %191 = vector.shape_cast %188 : vector<16x64xbf16> to vector<1x16x64xbf16>
    tpu.vector_store %arg7[%c0_61, %c0_62, %c0_63], %191 {strides = array<i32>} : memref<1x16x64xbf16, #tpu.memory_space<vmem>>, vector<1x16x64xbf16>,
    return
  }
  func.func @transform_0(%arg0: i32, %arg1: i32) -> i32 {
    %c0_i32 = arith.constant 0 : i32
    %c0_i32_0 = arith.constant 0 : i32
    return %c0_i32 : i32
  }
  func.func @transform_1(%arg0: i32, %arg1: i32) -> (i32, i32, i32) {
    %c0_i32 = arith.constant 0 : i32
    %c0_i32_0 = arith.constant 0 : i32
    return %arg0, %arg1, %c0_i32 : i32, i32, i32
  }
  func.func @transform_2(%arg0: i32, %arg1: i32) -> (i32, i32, i32) {
    %c0_i32 = arith.constant 0 : i32
    %c0_i32_0 = arith.constant 0 : i32
    %c0_i32_1 = arith.constant 0 : i32
    return %arg0, %c0_i32, %c0_i32_0 : i32, i32, i32
  }
  func.func @transform_3(%arg0: i32, %arg1: i32) -> (i32, i32, i32) {
    %c0_i32 = arith.constant 0 : i32
    %c0_i32_0 = arith.constant 0 : i32
    %c0_i32_1 = arith.constant 0 : i32
    return %arg0, %c0_i32, %c0_i32_0 : i32, i32, i32
  }
  func.func @transform_4(%arg0: i32, %arg1: i32) -> (i32, i32) {
    %c0_i32 = arith.constant 0 : i32
    %c0_i32_0 = arith.constant 0 : i32
    %c0_i32_1 = arith.constant 0 : i32
    return %c0_i32, %c0_i32_0 : i32, i32
  }
  func.func @transform_5(%arg0: i32, %arg1: i32) -> (i32, i32, i32) {
    %c0_i32 = arith.constant 0 : i32
    %c0_i32_0 = arith.constant 0 : i32
    return %arg0, %arg1, %c0_i32 : i32, i32, i32
  }
}

module attributes {stable_mosaic.version = 11 : i64} {
  func.func @_linear_kernel(%arg0: i32, %arg1: i32, %arg2: i32, %arg3: memref<32x64xbf16, #tpu.memory_space<vmem>>, %arg4: memref<64x64xbf16, #tpu.memory_space<vmem>>, %arg5: memref<1x64xbf16, #tpu.memory_space<vmem>>, %arg6: memref<32x64xbf16, #tpu.memory_space<vmem>>, %arg7: memref<32x64xf32, #tpu.memory_space<vmem>>) attributes {dimension_semantics = [#tpu.dimension_semantics<parallel>, #tpu.dimension_semantics<parallel>, #tpu.dimension_semantics<arbitrary>], iteration_bounds = array<i64: 1, 1, 1>, scalar_prefetch = 0 : i64, scratch_operands = 1 : i64, tpu.core_type = #tpu.core_type<tc>, window_params = [{transform_indices = @transform_0, window_bounds = array<i64: 32, 64>}, {transform_indices = @transform_1, window_bounds = array<i64: 64, 64>}, {transform_indices = @transform_2, window_bounds = array<i64: 1, 64>}, {transform_indices = @transform_3, window_bounds = array<i64: 32, 64>}]} {
    %c0_i32 = arith.constant 0 : i32
    %0 = arith.cmpi eq, %arg2, %c0_i32 : i32
    %1 = arith.extui %0 : i1 to i32
    %c0_i32_0 = arith.constant 0 : i32
    %2 = arith.cmpi ne, %1, %c0_i32_0 : i32
    scf.if %2 {
      %cst_10 = arith.constant 0.000000e+00 : f32
      %12 = vector.broadcast %cst_10 : f32 to vector<32x64xf32>
      %c0_11 = arith.constant 0 : index
      %c0_12 = arith.constant 0 : index
      %13 = vector.load %arg7[%c0_11, %c0_12] : memref<32x64xf32, #tpu.memory_space<vmem>>, vector<32x64xf32>
      tpu.vector_store %arg7[%c0_11, %c0_12], %12 {strides = array<i32>} : memref<32x64xf32, #tpu.memory_space<vmem>>, vector<32x64xf32>,
    } else {
    }
    %c0 = arith.constant 0 : index
    %c0_1 = arith.constant 0 : index
    %3 = vector.load %arg7[%c0, %c0_1] : memref<32x64xf32, #tpu.memory_space<vmem>>, vector<32x64xf32>
    %c0_2 = arith.constant 0 : index
    %c0_3 = arith.constant 0 : index
    %4 = vector.load %arg3[%c0_2, %c0_3] : memref<32x64xbf16, #tpu.memory_space<vmem>>, vector<32x64xbf16>
    %c0_4 = arith.constant 0 : index
    %c0_5 = arith.constant 0 : index
    %5 = vector.load %arg4[%c0_4, %c0_5] : memref<64x64xbf16, #tpu.memory_space<vmem>>, vector<64x64xbf16>
    %cst = arith.constant dense<0.000000e+00> : vector<32x64xf32>
    %6 = tpu.matmul %4, %5, %cst {dimension_numbers = #tpu.dot_dimension_numbers<[1], [0], [0], [1], [0, 0, 1, 1], [], []>} : vector<32x64xbf16>, vector<64x64xbf16>, vector<32x64xf32> -> vector<32x64xf32>
    %7 = arith.addf %3, %6 : vector<32x64xf32>
    %c0_6 = arith.constant 0 : index
    %c0_7 = arith.constant 0 : index
    %8 = vector.load %arg7[%c0_6, %c0_7] : memref<32x64xf32, #tpu.memory_space<vmem>>, vector<32x64xf32>
    tpu.vector_store %arg7[%c0_6, %c0_7], %7 {strides = array<i32>} : memref<32x64xf32, #tpu.memory_space<vmem>>, vector<32x64xf32>,
    %c0_i32_8 = arith.constant 0 : i32
    %9 = arith.cmpi eq, %arg2, %c0_i32_8 : i32
    %10 = arith.extui %9 : i1 to i32
    %c0_i32_9 = arith.constant 0 : i32
    %11 = arith.cmpi ne, %10, %c0_i32_9 : i32
    scf.if %11 {
      %c0_10 = arith.constant 0 : index
      %c0_11 = arith.constant 0 : index
      %12 = vector.load %arg7[%c0_10, %c0_11] : memref<32x64xf32, #tpu.memory_space<vmem>>, vector<32x64xf32>
      %c0_12 = arith.constant 0 : index
      %c0_13 = arith.constant 0 : index
      %13 = vector.load %arg5[%c0_12, %c0_13] : memref<1x64xbf16, #tpu.memory_space<vmem>>, vector<1x64xbf16>
      %14 = arith.extf %13 : vector<1x64xbf16> to vector<1x64xf32>
      %15 = vector.broadcast %14 : vector<1x64xf32> to vector<32x64xf32>
      %16 = arith.addf %12, %15 : vector<32x64xf32>
      %17 = arith.truncf %16 : vector<32x64xf32> to vector<32x64xbf16>
      %c0_14 = arith.constant 0 : index
      %c0_15 = arith.constant 0 : index
      %18 = vector.load %arg6[%c0_14, %c0_15] : memref<32x64xbf16, #tpu.memory_space<vmem>>, vector<32x64xbf16>
      tpu.vector_store %arg6[%c0_14, %c0_15], %17 {strides = array<i32>} : memref<32x64xbf16, #tpu.memory_space<vmem>>, vector<32x64xbf16>,
    } else {
    }
    return
  }
  func.func @transform_0(%arg0: i32, %arg1: i32, %arg2: i32) -> (i32, i32) {
    %c0_i32 = arith.constant 0 : i32
    return %arg0, %arg2 : i32, i32
  }
  func.func @transform_1(%arg0: i32, %arg1: i32, %arg2: i32) -> (i32, i32) {
    %c0_i32 = arith.constant 0 : i32
    return %arg2, %arg1 : i32, i32
  }
  func.func @transform_2(%arg0: i32, %arg1: i32, %arg2: i32) -> (i32, i32) {
    %c0_i32 = arith.constant 0 : i32
    %c0_i32_0 = arith.constant 0 : i32
    return %c0_i32, %arg1 : i32, i32
  }
  func.func @transform_3(%arg0: i32, %arg1: i32, %arg2: i32) -> (i32, i32) {
    %c0_i32 = arith.constant 0 : i32
    return %arg0, %arg1 : i32, i32
  }
}

</mosaic_0001>

<llo_original>
// kernel: samba_attention_forward.3
$region0: #{samba_attention_forward.3}
  #allocation0 [shape = 'u32[]', space=smem, size = 0x4, offset = 0x4, fixed_abs, tag = 'smem constant byte address 0x4 - core index']
  #allocation1 [shape = 'u32[144,128]{1,0:T(1,128)}', space=vmem, size = 0x12000, scoped, tag = 'internal scratch']
  #allocation2 [shape = 'f32[32,192]{1,0:T(8,128)}', space=vmem, size = 0x8000, scoped, tag = 'scratch operand']
  %s0 = inlined_call_operand.hbm [shape: bf16[32,64], index: 0, kind: input, shape index: {}]
  %s1 = inlined_call_operand.vmem [shape: bf16[64,192], index: 1, kind: input, shape index: {}]
  %s2 = inlined_call_operand.vmem [shape: bf16[1,192], index: 2, kind: input, shape index: {}]
  %s3 = inlined_call_operand.vmem [shape: bf16[32,64], index: 3, kind: output, shape index: {0}]
  %s4 = inlined_call_operand.vmem [shape: bf16[32,64], index: 4, kind: output, shape index: {1}]
  %s5 = inlined_call_operand.vmem [shape: bf16[32,64], index: 5, kind: output, shape index: {2}]
  %6 = xla_tuple %s3, %s4, %s5
  %s7 = sld [smem:[#allocation0]]
  $region50: #{samba_attention_forward.3} parent=0
    _
  %s9 = ssub.s32 1, %s7
  %s10 = scalar_select 0, %s9, %s7
  $region1: #{samba_attention_forward.3} parent=0
    #allocation3 [shape = 'u8[8192]{0}', space=vmem, size = 0x2000, scoped, tag = 'input window, operand 0, single buffered']
    #allocation4 [shape = 's32[1]{0}', space=sflag, size = 0x4, scoped, tag = 'scoped memory for samba_attention_forward.3']
    %11 = vsyncpa [#allocation4], 0
    // Predicated region
    $region2: #{samba_attention_forward.3} parent=1 // pred_check
      _
    $region3: #{samba_attention_forward.3} parent=1 // pred_check_branch
      %13 = sbr.rel (0) target = $region5
    $region4: #{samba_attention_forward.3} parent=1 // pred_region
      %s15 = ssub.s32 256, 256
      %16 = vsyncadd [#allocation4], %s15
      %s17 = sshll.u32 [#allocation3], 4
      %s18 = int_to_ptr.vmem [resolvable:$true] %s17
      %23 = dma.hbm_to_vmem [thread:$0]  %s0, 256, %s18, [#allocation4], 64, 64, 4
    $region5: #{samba_attention_forward.3} parent=1 // pred_fallthru
      _
    // Predicated region
    $region6: #{samba_attention_forward.3} parent=1 // pred_check
      _
    $region7: #{samba_attention_forward.3} parent=1 // pred_check_branch
      %25 = sbr.rel (0) target = $region9
    $region8: #{samba_attention_forward.3} parent=1 // pred_region
      _
    $region9: #{samba_attention_forward.3} parent=1 // pred_fallthru
      _
    // Predicated region
    $region10: #{samba_attention_forward.3} parent=1 // pred_check
      _
    $region11: #{samba_attention_forward.3} parent=1 // pred_check_branch
      %27 = sbr.rel (0) target = $region13
    $region12: #{samba_attention_forward.3} parent=1 // pred_region
      _
    $region13: #{samba_attention_forward.3} parent=1 // pred_fallthru
      _
    // Predicated region
    $region14: #{samba_attention_forward.3} parent=1 // pred_check
      _
    $region15: #{samba_attention_forward.3} parent=1 // pred_check_branch
      %29 = sbr.rel (0) target = $region17
    $region16: #{samba_attention_forward.3} parent=1 // pred_region
      %30 = dma.done [#allocation4], 256
    $region17: #{samba_attention_forward.3} parent=1 // pred_fallthru
      _
    %p32 = scmp.eq.s32.totalorder 0, 0
    // Predicated region
    $region18: #{samba_attention_forward.3} parent=1 // pred_check
      %p33 = pneg %p32
    $region19: #{samba_attention_forward.3} parent=1 // pred_check_branch
      %35 = sbr.rel (%p33) target = $region21
    $region20: #{samba_attention_forward.3} parent=1 // pred_region
      %36 = vst [vmem:[#allocation2] sm:$0xff] 0.0
      %vm37 = vcmask 523264
      %38 = vst.msk [vmem:[#allocation2 + $0x8] sm:$0xff] %vm37, 0.0
      %39 = vst [vmem:[#allocation2 + $0x10] sm:$0xff] 0.0
      %40 = vst.msk [vmem:[#allocation2 + $0x18] sm:$0xff] %vm37, 0.0
      %41 = vst [vmem:[#allocation2 + $0x20] sm:$0xff] 0.0
      %42 = vst.msk [vmem:[#allocation2 + $0x28] sm:$0xff] %vm37, 0.0
      %43 = vst [vmem:[#allocation2 + $0x30] sm:$0xff] 0.0
      %44 = vst.msk [vmem:[#allocation2 + $0x38] sm:$0xff] %vm37, 0.0
    $region21: #{samba_attention_forward.3} parent=1 // pred_fallthru
      _
    %v45 = vld [vmem:[#allocation2] sm:$0xff]
    %v46 = vld [vmem:[#allocation2 + $0x8] sm:$0xff]
    %v47 = vld [vmem:[#allocation2 + $0x10] sm:$0xff]
    %v48 = vld [vmem:[#allocation2 + $0x18] sm:$0xff]
    %v49 = vld [vmem:[#allocation2 + $0x20] sm:$0xff]
    %v50 = vld [vmem:[#allocation2 + $0x28] sm:$0xff]
    %v51 = vld [vmem:[#allocation2 + $0x30] sm:$0xff]
    %v52 = vld [vmem:[#allocation2 + $0x38] sm:$0xff]
    %v53 = vld [vmem:[#allocation3] sm:$0xf]
    %v54 = vld [vmem:[#allocation3 + $0x4] sm:$0xf]
    %v55 = vld [vmem:[#allocation3 + $0x8] sm:$0xf]
    %v56 = vld [vmem:[#allocation3 + $0xc] sm:$0xf]
    %v57 = vld [vmem:[%s1] sm:$0xff]
    %v58 = vld [vmem:[%s1 + $0x8] sm:$0xff]
    %v59 = vld [vmem:[%s1 + $0x10] sm:$0xff]
    %v60 = vld [vmem:[%s1 + $0x18] sm:$0xff]
    %v61 = vld [vmem:[%s1 + $0x20] sm:$0xff]
    %v62 = vld [vmem:[%s1 + $0x28] sm:$0xff]
    %v63 = vld [vmem:[%s1 + $0x30] sm:$0xff]
    %v64 = vld [vmem:[%s1 + $0x38] sm:$0xff]
    %v69 = vunpack.c.l.b16 %v53
    %v70 = vunpack.c.l.b16 %v54
    %v71 = vunpack.c.l.b16 %v55
    %v72 = vunpack.c.l.b16 %v56
    %v73 = vpack.c.b16 %v70, %v69
    %v74 = vpack.c.b16 %v72, %v71
    %v83 = vunpack.c.l.b16 %v57
    %v84 = vunpack.c.h.b16 %v57
    %v85 = vunpack.c.l.b16 %v58
    %v86 = vunpack.c.h.b16 %v58
    %v87 = vunpack.c.l.b16 %v59
    %v88 = vunpack.c.h.b16 %v59
    %v89 = vunpack.c.l.b16 %v60
    %v90 = vunpack.c.h.b16 %v60
    %v91 = vunpack.c.l.b16 %v61
    %v92 = vunpack.c.h.b16 %v61
    %v93 = vunpack.c.l.b16 %v62
    %v94 = vunpack.c.h.b16 %v62
    %v95 = vunpack.c.l.b16 %v63
    %v96 = vunpack.c.h.b16 %v63
    %v97 = vunpack.c.l.b16 %v64
    %v98 = vunpack.c.h.b16 %v64
    %v99 = vpack.c.b16 %v85, %v83
    %v100 = vpack.c.b16 %v86, %v84
    %v101 = vpack.c.b16 %v89, %v87
    %v102 = vpack.c.b16 %v90, %v88
    %v103 = vpack.c.b16 %v93, %v91
    %v104 = vpack.c.b16 %v94, %v92
    %v105 = vpack.c.b16 %v97, %v95
    %v106 = vpack.c.b16 %v98, %v96
    %vm115 = vcmask 523264
    %v117 = vsel %vm115, %v73, 0
    %v120 = vsel %vm115, %v74, 0
    %122 = vmatprep.subr.bf16.mxu0 %v100
    %123 = vmatpush1.bf16.msra.mxu0 %v99
    %124 = vmatprep.subr.bf16.mxu0 %v102
    %125 = vmatpush1.bf16.msra.mxu0 %v101
    %126 = vmatprep.subr.bf16.mxu0 %v104
    %127 = vmatpush1.bf16.msra.mxu0 %v103
    %128 = vmatprep.subr.bf16.mxu0 %v106
    %129 = vmatpush1.bf16.msra.mxu0 %v105
    %130 = vmatprep.subr.bf16.mxu0 0
    %131 = vmatpush1.bf16.msra.mxu0 0
    %132 = vmatprep.subr.bf16.mxu0 0
    %133 = vmatpush1.bf16.msra.mxu0 0
    %134 = vmatprep.subr.bf16.mxu0 0
    %135 = vmatpush1.bf16.msra.mxu0 0
    %136 = vmatprep.subr.bf16.mxu0 0
    %137 = vmatpush1.bf16.msra.mxu0 0
    %138 = vmatprep.subr.bf16.mxu0 0
    %139 = vmatpush1.bf16.msra.mxu0 0
    %140 = vmatprep.subr.bf16.mxu0 0
    %141 = vmatpush1.bf16.msra.mxu0 0
    %142 = vmatprep.subr.bf16.mxu0 0
    %143 = vmatpush1.bf16.msra.mxu0 0
    %144 = vmatprep.subr.bf16.mxu0 0
    %145 = vmatpush1.bf16.msra.mxu0 0
    %146 = vmatprep.subr.bf16.mxu0 0
    %147 = vmatpush1.bf16.msra.mxu0 0
    %148 = vmatprep.subr.bf16.mxu0 0
    %149 = vmatpush1.bf16.msra.mxu0 0
    %150 = vmatprep.subr.bf16.mxu0 0
    %151 = vmatpush1.bf16.msra.mxu0 0
    %152 = vmatprep.subr.bf16.mxu0 0
    %153 = vmatpush1.bf16.msra.mxu0 0
    %154 = vmatprep.mubr.bf16.mxu0 0
    %155 = vmatmul.mubr.bf16.gmra.mrb[0].mxu0 %v117
    %v156 = vpop.f32.mrb[0].mxu0
    %v157 = vadd.f32 0.0, %v156
    %v158 = vpop.f32.mrb[0].mxu0
    %v159 = vadd.f32 0.0, %v158
    %v160 = vpop.f32.mrb[0].mxu0
    %v161 = vadd.f32 0.0, %v160
    %v162 = vpop.f32.mrb[0].mxu0
    %v163 = vadd.f32 0.0, %v162
    %164 = vmatprep.mubr.bf16.mxu0 0
    %165 = vmatmul.mubr.bf16.gmra.mrb[0].mxu0 %v120
    %v166 = vpop.f32.mrb[0].mxu0
    %v167 = vadd.f32 0.0, %v166
    %v168 = vpop.f32.mrb[0].mxu0
    %v169 = vadd.f32 0.0, %v168
    %v170 = vpop.f32.mrb[0].mxu0
    %v171 = vadd.f32 0.0, %v170
    %v172 = vpop.f32.mrb[0].mxu0
    %v173 = vadd.f32 0.0, %v172
    %174 = vdwg.mxu0
    %v175 = vadd.f32 %v45, %v157
    %v176 = vadd.f32 %v46, %v159
    %v177 = vadd.f32 %v47, %v161
    %v178 = vadd.f32 %v48, %v163
    %v179 = vadd.f32 %v49, %v167
    %v180 = vadd.f32 %v50, %v169
    %v181 = vadd.f32 %v51, %v171
    %v182 = vadd.f32 %v52, %v173
    %183 = vst [vmem:[#allocation2] sm:$0xff] %v175
    %184 = vst.msk [vmem:[#allocation2 + $0x8] sm:$0xff] %vm115, %v176
    %185 = vst [vmem:[#allocation2 + $0x10] sm:$0xff] %v177
    %186 = vst.msk [vmem:[#allocation2 + $0x18] sm:$0xff] %vm115, %v178
    %187 = vst [vmem:[#allocation2 + $0x20] sm:$0xff] %v179
    %188 = vst.msk [vmem:[#allocation2 + $0x28] sm:$0xff] %vm115, %v180
    %189 = vst [vmem:[#allocation2 + $0x30] sm:$0xff] %v181
    %190 = vst.msk [vmem:[#allocation2 + $0x38] sm:$0xff] %vm115, %v182
    // Predicated region
    $region22: #{samba_attention_forward.3} parent=1 // pred_check
      %p191 = pneg %p32
    $region23: #{samba_attention_forward.3} parent=1 // pred_check_branch
      %193 = sbr.rel (%p191) target = $region25
    $region24: #{samba_attention_forward.3} parent=1 // pred_region
      %v194 = vld [vmem:[#allocation2] sm:$0xff]
      %v195 = vld [vmem:[#allocation2 + $0x8] sm:$0xff]
      %v196 = vld [vmem:[#allocation2 + $0x10] sm:$0xff]
      %v197 = vld [vmem:[#allocation2 + $0x18] sm:$0xff]
      %v198 = vld [vmem:[#allocation2 + $0x20] sm:$0xff]
      %v199 = vld [vmem:[#allocation2 + $0x28] sm:$0xff]
      %v200 = vld [vmem:[#allocation2 + $0x30] sm:$0xff]
      %v201 = vld [vmem:[#allocation2 + $0x38] sm:$0xff]
      %v202 = vld [vmem:[%s2] sm:$0x3]
      %v203 = vunpack.c.l.bf16 %v202
      %v205 = vlaneseq
      %v206 = vshrl.u32 %v205, 7
      %v207 = vsub.s32 0, %v206
      %v208 = vrot.slane %v203, %v207
      %v209 = vlaneseq
      %v210 = vshrl.u32 %v209, 7
      %v211 = vsub.s32 2, %v210
      %v212 = vrot.slane %v203, %v211
      %v215 = vlaneseq
      %v216 = vshrl.u32 %v215, 7
      %v217 = vsub.s32 0, %v216
      %v218 = vrot.slane %v208, %v217
      %v219 = vlaneseq
      %v220 = vshrl.u32 %v219, 7
      %v221 = vsub.s32 0, %v220
      %v222 = vrot.slane %v212, %v221
      %v223 = vadd.f32 %v194, %v218
      %v224 = vadd.f32 %v195, %v222
      %v225 = vadd.f32 %v196, %v218
      %v226 = vadd.f32 %v197, %v222
      %v227 = vadd.f32 %v198, %v218
      %v228 = vadd.f32 %v199, %v222
      %v229 = vadd.f32 %v200, %v218
      %v230 = vadd.f32 %v201, %v222
      %v231 = vpack.c.bf16 %v225, %v223
      %v232 = vpack.c.bf16 %v229, %v227
      %v235 = vunpack.c.l.b16 %v231
      %v236 = vunpack.c.h.b16 %v231
      %v237 = vunpack.c.l.b16 %v232
      %v238 = vunpack.c.h.b16 %v232
      %v239 = vpack.c.b16 %v235, %v235
      %v240 = vpack.c.b16 %v236, %v236
      %v241 = vpack.c.b16 %v237, %v237
      %v242 = vpack.c.b16 %v238, %v238
      %vm247 = vcmask 519168
      %248 = vst.msk [vmem:[%s3] sm:$0xf] %vm247, %v239
      %249 = vst.msk [vmem:[%s3 + $0x4] sm:$0xf] %vm247, %v240
      %250 = vst.msk [vmem:[%s3 + $0x8] sm:$0xf] %vm247, %v241
      %251 = vst.msk [vmem:[%s3 + $0xc] sm:$0xf] %vm247, %v242
      %252 = vrot.lane.b32.xlu0 %v239, 64
      %v253 = vpop.permute.xlu0 %252
      %254 = vrot.lane.b32.xlu0 %v240, 64
      %v255 = vpop.permute.xlu0 %254
      %256 = vrot.lane.b32.xlu0 %v241, 64
      %v257 = vpop.permute.xlu0 %256
      %258 = vrot.lane.b32.xlu0 %v242, 64
      %v259 = vpop.permute.xlu0 %258
      %264 = vst.msk [vmem:[%s4] sm:$0xf] %vm247, %v253
      %265 = vst.msk [vmem:[%s4 + $0x4] sm:$0xf] %vm247, %v255
      %266 = vst.msk [vmem:[%s4 + $0x8] sm:$0xf] %vm247, %v257
      %267 = vst.msk [vmem:[%s4 + $0xc] sm:$0xf] %vm247, %v259
      %v268 = vpack.c.bf16 %v226, %v224
      %v269 = vpack.c.bf16 %v230, %v228
      %v272 = vunpack.c.l.b16 %v268
      %v273 = vunpack.c.h.b16 %v268
      %v274 = vunpack.c.l.b16 %v269
      %v275 = vunpack.c.h.b16 %v269
      %v276 = vpack.c.b16 %v272, %v272
      %v277 = vpack.c.b16 %v273, %v273
      %v278 = vpack.c.b16 %v274, %v274
      %v279 = vpack.c.b16 %v275, %v275
      %284 = vst.msk [vmem:[%s5] sm:$0xf] %vm247, %v276
      %285 = vst.msk [vmem:[%s5 + $0x4] sm:$0xf] %vm247, %v277
      %286 = vst.msk [vmem:[%s5 + $0x8] sm:$0xf] %vm247, %v278
      %287 = vst.msk [vmem:[%s5 + $0xc] sm:$0xf] %vm247, %v279
    $region25: #{samba_attention_forward.3} parent=1 // pred_fallthru
      _
    // Predicated region
    $region26: #{samba_attention_forward.3} parent=1 // pred_check
      _
    $region27: #{samba_attention_forward.3} parent=1 // pred_check_branch
      %289 = sbr.rel (0) target = $region29
    $region28: #{samba_attention_forward.3} parent=1 // pred_region
      _
    $region29: #{samba_attention_forward.3} parent=1 // pred_fallthru
      _
    // Predicated region
    $region30: #{samba_attention_forward.3} parent=1 // pred_check
      _
    $region31: #{samba_attention_forward.3} parent=1 // pred_check_branch
      %291 = sbr.rel (0) target = $region33
    $region32: #{samba_attention_forward.3} parent=1 // pred_region
      _
    $region33: #{samba_attention_forward.3} parent=1 // pred_fallthru
      _
    // Predicated region
    $region34: #{samba_attention_forward.3} parent=1 // pred_check
      _
    $region35: #{samba_attention_forward.3} parent=1 // pred_check_branch
      %293 = sbr.rel (0) target = $region37
    $region36: #{samba_attention_forward.3} parent=1 // pred_region
      _
    $region37: #{samba_attention_forward.3} parent=1 // pred_fallthru
      _
    // Predicated region
    $region38: #{samba_attention_forward.3} parent=1 // pred_check
      _
    $region39: #{samba_attention_forward.3} parent=1 // pred_check_branch
      %295 = sbr.rel (0) target = $region41
    $region40: #{samba_attention_forward.3} parent=1 // pred_region
      _
    $region41: #{samba_attention_forward.3} parent=1 // pred_fallthru
      _
    // Predicated region
    $region42: #{samba_attention_forward.3} parent=1 // pred_check
      _
    $region43: #{samba_attention_forward.3} parent=1 // pred_check_branch
      %297 = sbr.rel (0) target = $region45
    $region44: #{samba_attention_forward.3} parent=1 // pred_region
      _
    $region45: #{samba_attention_forward.3} parent=1 // pred_fallthru
      _
    // Predicated region
    $region46: #{samba_attention_forward.3} parent=1 // pred_check
      _
    $region47: #{samba_attention_forward.3} parent=1 // pred_check_branch
      %299 = sbr.rel (0) target = $region49
    $region48: #{samba_attention_forward.3} parent=1 // pred_region
      _
    $region49: #{samba_attention_forward.3} parent=1 // pred_fallthru
      _
    %300 = vsyncpa [#allocation4], 1

// kernel: samba_attention_forward.5
$region0: #{samba_attention_forward.5}
  #allocation0 [shape = 'u32[]', space=smem, size = 0x4, offset = 0x4, fixed_abs, tag = 'smem constant byte address 0x4 - core index']
  #allocation1 [shape = 'u32[144,128]{1,0:T(1,128)}', space=vmem, size = 0x12000, scoped, tag = 'internal scratch']
  #allocation2 [shape = 'f32[32,64]{1,0:T(8,128)}', space=vmem, size = 0x4000, scoped, tag = 'scratch operand']
  %s0 = inlined_call_operand.vmem [shape: bf16[32,64], index: 0, kind: input, shape index: {}]
  %s1 = inlined_call_operand.vmem [shape: bf16[64,64], index: 1, kind: input, shape index: {}]
  %s2 = inlined_call_operand.vmem [shape: bf16[1,64], index: 2, kind: input, shape index: {}]
  %s3 = inlined_call_operand.hbm [shape: bf16[32,64], index: 3, kind: output, shape index: {}]
  %s4 = sld [smem:[#allocation0]]
  $region30: #{samba_attention_forward.5} parent=0
    _
  %s6 = ssub.s32 1, %s4
  %s7 = scalar_select 0, %s6, %s4
  $region1: #{samba_attention_forward.5} parent=0
    #allocation3 [shape = 'u8[8192]{0}', space=vmem, size = 0x2000, scoped, tag = 'output window, operand 0, single buffered']
    #allocation4 [shape = 's32[1]{0}', space=sflag, size = 0x4, scoped, tag = 'scoped memory for samba_attention_forward.5']
    %8 = vsyncpa [#allocation4], 0
    // Predicated region
    $region2: #{samba_attention_forward.5} parent=1 // pred_check
      _
    $region3: #{samba_attention_forward.5} parent=1 // pred_check_branch
      %10 = sbr.rel (0) target = $region5
    $region4: #{samba_attention_forward.5} parent=1 // pred_region
      _
    $region5: #{samba_attention_forward.5} parent=1 // pred_fallthru
      _
    // Predicated region
    $region6: #{samba_attention_forward.5} parent=1 // pred_check
      _
    $region7: #{samba_attention_forward.5} parent=1 // pred_check_branch
      %12 = sbr.rel (0) target = $region9
    $region8: #{samba_attention_forward.5} parent=1 // pred_region
      _
    $region9: #{samba_attention_forward.5} parent=1 // pred_fallthru
      _
    // Predicated region
    $region10: #{samba_attention_forward.5} parent=1 // pred_check
      _
    $region11: #{samba_attention_forward.5} parent=1 // pred_check_branch
      %14 = sbr.rel (0) target = $region13
    $region12: #{samba_attention_forward.5} parent=1 // pred_region
      _
    $region13: #{samba_attention_forward.5} parent=1 // pred_fallthru
      _
    %p16 = scmp.eq.s32.totalorder 0, 0
    // Predicated region
    $region14: #{samba_attention_forward.5} parent=1 // pred_check
      %p17 = pneg %p16
    $region15: #{samba_attention_forward.5} parent=1 // pred_check_branch
      %19 = sbr.rel (%p17) target = $region17
    $region16: #{samba_attention_forward.5} parent=1 // pred_region
      %vm20 = vcmask 523264
      %21 = vst.msk [vmem:[#allocation2] sm:$0xff] %vm20, 0.0
      %22 = vst.msk [vmem:[#allocation2 + $0x8] sm:$0xff] %vm20, 0.0
      %23 = vst.msk [vmem:[#allocation2 + $0x10] sm:$0xff] %vm20, 0.0
      %24 = vst.msk [vmem:[#allocation2 + $0x18] sm:$0xff] %vm20, 0.0
    $region17: #{samba_attention_forward.5} parent=1 // pred_fallthru
      _
    %v25 = vld [vmem:[#allocation2] sm:$0xff]
    %v26 = vld [vmem:[#allocation2 + $0x8] sm:$0xff]
    %v27 = vld [vmem:[#allocation2 + $0x10] sm:$0xff]
    %v28 = vld [vmem:[#allocation2 + $0x18] sm:$0xff]
    %v29 = vld [vmem:[%s0] sm:$0xf]
    %v30 = vld [vmem:[%s0 + $0x4] sm:$0xf]
    %v31 = vld [vmem:[%s0 + $0x8] sm:$0xf]
    %v32 = vld [vmem:[%s0 + $0xc] sm:$0xf]
    %v33 = vld [vmem:[%s1] sm:$0xf]
    %v34 = vld [vmem:[%s1 + $0x4] sm:$0xf]
    %v35 = vld [vmem:[%s1 + $0x8] sm:$0xf]
    %v36 = vld [vmem:[%s1 + $0xc] sm:$0xf]
    %v37 = vld [vmem:[%s1 + $0x10] sm:$0xf]
    %v38 = vld [vmem:[%s1 + $0x14] sm:$0xf]
    %v39 = vld [vmem:[%s1 + $0x18] sm:$0xf]
    %v40 = vld [vmem:[%s1 + $0x1c] sm:$0xf]
    %v45 = vunpack.c.l.b16 %v29
    %v46 = vunpack.c.l.b16 %v30
    %v47 = vunpack.c.l.b16 %v31
    %v48 = vunpack.c.l.b16 %v32
    %v49 = vpack.c.b16 %v46, %v45
    %v50 = vpack.c.b16 %v48, %v47
    %v59 = vunpack.c.l.b16 %v33
    %v60 = vunpack.c.l.b16 %v34
    %v61 = vunpack.c.l.b16 %v35
    %v62 = vunpack.c.l.b16 %v36
    %v63 = vunpack.c.l.b16 %v37
    %v64 = vunpack.c.l.b16 %v38
    %v65 = vunpack.c.l.b16 %v39
    %v66 = vunpack.c.l.b16 %v40
    %v67 = vpack.c.b16 %v60, %v59
    %v68 = vpack.c.b16 %v62, %v61
    %v69 = vpack.c.b16 %v64, %v63
    %v70 = vpack.c.b16 %v66, %v65
    %vm75 = vcmask 523264
    %v77 = vsel %vm75, %v49, 0
    %v80 = vsel %vm75, %v50, 0
    %82 = vmatprep.subr.bf16.mxu0 0
    %83 = vmatpush1.bf16.msra.mxu0 %v67
    %84 = vmatprep.subr.bf16.mxu0 0
    %85 = vmatpush1.bf16.msra.mxu0 %v68
    %86 = vmatprep.subr.bf16.mxu0 0
    %87 = vmatpush1.bf16.msra.mxu0 %v69
    %88 = vmatprep.subr.bf16.mxu0 0
    %89 = vmatpush1.bf16.msra.mxu0 %v70
    %90 = vmatprep.subr.bf16.mxu0 0
    %91 = vmatpush1.bf16.msra.mxu0 0
    %92 = vmatprep.subr.bf16.mxu0 0
    %93 = vmatpush1.bf16.msra.mxu0 0
    %94 = vmatprep.subr.bf16.mxu0 0
    %95 = vmatpush1.bf16.msra.mxu0 0
    %96 = vmatprep.subr.bf16.mxu0 0
    %97 = vmatpush1.bf16.msra.mxu0 0
    %98 = vmatprep.subr.bf16.mxu0 0
    %99 = vmatpush1.bf16.msra.mxu0 0
    %100 = vmatprep.subr.bf16.mxu0 0
    %101 = vmatpush1.bf16.msra.mxu0 0
    %102 = vmatprep.subr.bf16.mxu0 0
    %103 = vmatpush1.bf16.msra.mxu0 0
    %104 = vmatprep.subr.bf16.mxu0 0
    %105 = vmatpush1.bf16.msra.mxu0 0
    %106 = vmatprep.subr.bf16.mxu0 0
    %107 = vmatpush1.bf16.msra.mxu0 0
    %108 = vmatprep.subr.bf16.mxu0 0
    %109 = vmatpush1.bf16.msra.mxu0 0
    %110 = vmatprep.subr.bf16.mxu0 0
    %111 = vmatpush1.bf16.msra.mxu0 0
    %112 = vmatprep.subr.bf16.mxu0 0
    %113 = vmatpush1.bf16.msra.mxu0 0
    %114 = vmatprep.mubr.bf16.mxu0 0
    %115 = vmatmul.mubr.bf16.gmra.mrb[0].mxu0 %v77
    %v116 = vpop.f32.mrb[0].mxu0
    %v117 = vadd.f32 0.0, %v116
    %v118 = vpop.f32.mrb[0].mxu0
    %v119 = vpop.f32.mrb[0].mxu0
    %v120 = vadd.f32 0.0, %v119
    %v121 = vpop.f32.mrb[0].mxu0
    %122 = vmatprep.mubr.bf16.mxu0 0
    %123 = vmatmul.mubr.bf16.gmra.mrb[0].mxu0 %v80
    %v124 = vpop.f32.mrb[0].mxu0
    %v125 = vadd.f32 0.0, %v124
    %v126 = vpop.f32.mrb[0].mxu0
    %v127 = vpop.f32.mrb[0].mxu0
    %v128 = vadd.f32 0.0, %v127
    %v129 = vpop.f32.mrb[0].mxu0
    %130 = vdwg.mxu0
    %v131 = vadd.f32 %v25, %v117
    %v132 = vadd.f32 %v26, %v120
    %v133 = vadd.f32 %v27, %v125
    %v134 = vadd.f32 %v28, %v128
    %135 = vst.msk [vmem:[#allocation2] sm:$0xff] %vm75, %v131
    %136 = vst.msk [vmem:[#allocation2 + $0x8] sm:$0xff] %vm75, %v132
    %137 = vst.msk [vmem:[#allocation2 + $0x10] sm:$0xff] %vm75, %v133
    %138 = vst.msk [vmem:[#allocation2 + $0x18] sm:$0xff] %vm75, %v134
    // Predicated region
    $region18: #{samba_attention_forward.5} parent=1 // pred_check
      %p139 = pneg %p16
    $region19: #{samba_attention_forward.5} parent=1 // pred_check_branch
      %141 = sbr.rel (%p139) target = $region21
    $region20: #{samba_attention_forward.5} parent=1 // pred_region
      %v142 = vld [vmem:[#allocation2] sm:$0xff]
      %v143 = vld [vmem:[#allocation2 + $0x8] sm:$0xff]
      %v144 = vld [vmem:[#allocation2 + $0x10] sm:$0xff]
      %v145 = vld [vmem:[#allocation2 + $0x18] sm:$0xff]
      %v146 = vld [vmem:[%s2] sm:$0x1]
      %v147 = vunpack.c.l.bf16 %v146
      %v148 = vlaneseq
      %v149 = vshrl.u32 %v148, 7
      %v150 = vsub.s32 0, %v149
      %v151 = vrot.slane %v147, %v150
      %v152 = vadd.f32 %v142, %v151
      %v153 = vadd.f32 %v143, %v151
      %v154 = vadd.f32 %v144, %v151
      %v155 = vadd.f32 %v145, %v151
      %v156 = vpack.c.bf16 %v153, %v152
      %v157 = vpack.c.bf16 %v155, %v154
      %v160 = vunpack.c.l.b16 %v156
      %v161 = vunpack.c.h.b16 %v156
      %v162 = vunpack.c.l.b16 %v157
      %v163 = vunpack.c.h.b16 %v157
      %v164 = vpack.c.b16 %v160, %v160
      %v165 = vpack.c.b16 %v161, %v161
      %v166 = vpack.c.b16 %v162, %v162
      %v167 = vpack.c.b16 %v163, %v163
      %vm172 = vcmask 519168
      %173 = vst.msk [vmem:[#allocation3] sm:$0xf] %vm172, %v164
      %174 = vst.msk [vmem:[#allocation3 + $0x4] sm:$0xf] %vm172, %v165
      %175 = vst.msk [vmem:[#allocation3 + $0x8] sm:$0xf] %vm172, %v166
      %176 = vst.msk [vmem:[#allocation3 + $0xc] sm:$0xf] %vm172, %v167
    $region21: #{samba_attention_forward.5} parent=1 // pred_fallthru
      _
    // Predicated region
    $region22: #{samba_attention_forward.5} parent=1 // pred_check
      _
    $region23: #{samba_attention_forward.5} parent=1 // pred_check_branch
      %178 = sbr.rel (0) target = $region25
    $region24: #{samba_attention_forward.5} parent=1 // pred_region
      %s180 = ssub.s32 256, 256
      %181 = vsyncadd [#allocation4], %s180
      %s182 = sshll.u32 [#allocation3], 4
      %s183 = int_to_ptr.vmem [resolvable:$true] %s182
      %188 = dma.vmem_to_hbm [thread:$0]  %s183, 256, %s3, [#allocation4], 64, 64, 4
    $region25: #{samba_attention_forward.5} parent=1 // pred_fallthru
      _
    // Predicated region
    $region26: #{samba_attention_forward.5} parent=1 // pred_check
      _
    $region27: #{samba_attention_forward.5} parent=1 // pred_check_branch
      %190 = sbr.rel (0) target = $region29
    $region28: #{samba_attention_forward.5} parent=1 // pred_region
      %191 = dma.done [#allocation4], 256
    $region29: #{samba_attention_forward.5} parent=1 // pred_fallthru
      _
    %192 = vsyncpa [#allocation4], 1

// kernel: samba_attention_forward.4
$region0: #{samba_attention_forward.4}
  #allocation0 [shape = 'u32[]', space=smem, size = 0x4, offset = 0x4, fixed_abs, tag = 'smem constant byte address 0x4 - core index']
  #allocation1 [shape = 'u32[144,128]{1,0:T(1,128)}', space=vmem, size = 0x12000, scoped, tag = 'internal scratch']
  #allocation2 [shape = 'f32[1]{0:T(128)S(6)}', space=smem, size = 0x200, scoped, tag = 'scoped memory for samba_attention_forward.4']
  %s0 = inlined_call_operand.<no memory space> [shape: f32[1], index: 0, kind: input, shape index: {}]
  %s1 = inlined_call_operand.vmem [shape: bf16[2,16,64], index: 1, kind: input, shape index: {}]
  %s2 = inlined_call_operand.vmem [shape: bf16[2,16,64], index: 2, kind: input, shape index: {}]
  %s3 = inlined_call_operand.vmem [shape: bf16[2,16,64], index: 3, kind: input, shape index: {}]
  %s4 = inlined_call_operand.vmem [shape: f32[1,32], index: 4, kind: input, shape index: {}]
  %s5 = inlined_call_operand.vmem [shape: bf16[2,16,64], index: 5, kind: output, shape index: {}]
  %s6 = sld [smem:[#allocation0]]
  $region67: #{samba_attention_forward.4} parent=0
    _
  %s8 = ssub.s32 1, %s6
  %s9 = scalar_select 0, %s8, %s6
  %10 = sst [smem:[#allocation2]] %s0
  loop: start=0, step=1, limit=4
  $region2: #{samba_attention_forward.4} parent=0 // loop_pre_header
    _
  $region3: #{samba_attention_forward.4} parent=0 // loop_header
    %s12 = sphi 0, %s16
    %p13 = scmp.ge.s32.totalorder %s12, 4
    %s19 = sphi 0, %s31
    %s20 = sphi 0, %s27
    %s21 = sphi 0, %s19
    %s22 = sphi 0, %s20
    %s23 = sphi 0, %s21
    %s24 = sphi 0, %s22
    %s32 = sphi 0, %s32
    %s34 = sphi 0, %s32
    %s35 = sphi 0, %s34
    %s49 = sphi 0, %s35
    %s57 = sphi 0, %s59
    %s60 = sphi 0, %s57
    %s61 = sphi 0, %s60
    %s77 = sphi 0, %s61
    %s83 = sphi 0, %s85
    %s86 = sphi 0, %s83
    %s87 = sphi 0, %s86
    %s103 = sphi 0, %s87
    %s109 = sphi 0, %s111
    %s112 = sphi 0, %s109
    %s113 = sphi 0, %s112
    %s129 = sphi 0, %s113
    %s133 = sphi 0, %s133
    %s135 = sphi 0, %s133
    %s136 = sphi 0, %s135
    %s150 = sphi 0, %s136
    %s158 = sphi 0, %s160
    %s161 = sphi 0, %s158
    %s162 = sphi 0, %s161
    %s178 = sphi 0, %s162
  $region4: #{samba_attention_forward.4} parent=0 // loop_header_branch
    %15 = sbr.rel (%p13) target = $region8
  $region5: #{samba_attention_forward.4} parent=0 // loop_body
    %s17 = ssub.s32 %s12, 1
    %s18 = ssub.s32 %s12, 2
    %s25 = sadd.s32 1, %s20
    %p26 = scmp.ge.s32.totalorder %s25, 1
    %s27 = scalar_select %p26, 0, %s25
    %s28 = sadd.s32 1, %s19
    %s29 = scalar_select %p26, %s28, %s19
    %p30 = scmp.ge.s32.totalorder %s29, 2
    %s31 = scalar_select %p30, 0, %s29
    %s33 = sadd.s32 %s32, 1
    %p36 = scmp.eq.s32.totalorder %s12, 1
    %p37 = scmp.ne.s32.totalorder %s32, %s34
    %p38 = scmp.eq.s32.totalorder %s12, 0
    %p39 = por %p37, %p38
    %p40 = scmp.ne.s32.totalorder %s32, %s34
    %p41 = scmp.eq.s32.totalorder %s17, 1
    %p42 = por %p40, %p41
    %p43 = scmp.ne.s32.totalorder %s34, %s35
    %p44 = scmp.eq.s32.totalorder %s17, 0
    %p45 = por %p43, %p44
    %p46 = scmp.ne.s32.totalorder %s34, %s35
    %p47 = scmp.eq.s32.totalorder %s18, 1
    %p48 = por %p46, %p47
    %p50 = scmp.ne.s32.totalorder %s35, %s49
    %p51 = scmp.eq.s32.totalorder %s18, 0
    %p52 = por %p50, %p51
    %s53 = ssub.s32 %s19, %s31
    %s54 = ssub.s32 %s20, %s27
    %s55 = sor.u32 %s53, %s54
    %p56 = scmp.eq.s32.totalorder %s55, 0
    %s58 = sadd.s32 %s57, 1
    %s59 = scalar_select %p56, %s57, %s58
    %p62 = pneg %p56
    %p63 = scmp.eq.s32.totalorder %s12, 1
    %p64 = por %p62, %p63
    %p65 = scmp.ne.s32.totalorder %s57, %s60
    %p66 = scmp.eq.s32.totalorder %s12, 0
    %p67 = por %p65, %p66
    %p68 = scmp.ne.s32.totalorder %s57, %s60
    %p69 = scmp.eq.s32.totalorder %s17, 1
    %p70 = por %p68, %p69
    %p71 = scmp.ne.s32.totalorder %s60, %s61
    %p72 = scmp.eq.s32.totalorder %s17, 0
    %p73 = por %p71, %p72
    %p74 = scmp.ne.s32.totalorder %s60, %s61
    %p75 = scmp.eq.s32.totalorder %s18, 1
    %p76 = por %p74, %p75
    %p78 = scmp.ne.s32.totalorder %s61, %s77
    %p79 = scmp.eq.s32.totalorder %s18, 0
    %p80 = por %p78, %p79
    %s81 = ssub.s32 %s19, %s31
    %p82 = scmp.eq.s32.totalorder %s81, 0
    %s84 = sadd.s32 %s83, 1
    %s85 = scalar_select %p82, %s83, %s84
    %p88 = pneg %p82
    %p89 = scmp.eq.s32.totalorder %s12, 1
    %p90 = por %p88, %p89
    %p91 = scmp.ne.s32.totalorder %s83, %s86
    %p92 = scmp.eq.s32.totalorder %s12, 0
    %p93 = por %p91, %p92
    %p94 = scmp.ne.s32.totalorder %s83, %s86
    %p95 = scmp.eq.s32.totalorder %s17, 1
    %p96 = por %p94, %p95
    %p97 = scmp.ne.s32.totalorder %s86, %s87
    %p98 = scmp.eq.s32.totalorder %s17, 0
    %p99 = por %p97, %p98
    %p100 = scmp.ne.s32.totalorder %s86, %s87
    %p101 = scmp.eq.s32.totalorder %s18, 1
    %p102 = por %p100, %p101
    %p104 = scmp.ne.s32.totalorder %s87, %s103
    %p105 = scmp.eq.s32.totalorder %s18, 0
    %p106 = por %p104, %p105
    %s107 = ssub.s32 %s19, %s31
    %p108 = scmp.eq.s32.totalorder %s107, 0
    %s110 = sadd.s32 %s109, 1
    %s111 = scalar_select %p108, %s109, %s110
    %p114 = pneg %p108
    %p115 = scmp.eq.s32.totalorder %s12, 1
    %p116 = por %p114, %p115
    %p117 = scmp.ne.s32.totalorder %s109, %s112
    %p118 = scmp.eq.s32.totalorder %s12, 0
    %p119 = por %p117, %p118
    %p120 = scmp.ne.s32.totalorder %s109, %s112
    %p121 = scmp.eq.s32.totalorder %s17, 1
    %p122 = por %p120, %p121
    %p123 = scmp.ne.s32.totalorder %s112, %s113
    %p124 = scmp.eq.s32.totalorder %s17, 0
    %p125 = por %p123, %p124
    %p126 = scmp.ne.s32.totalorder %s112, %s113
    %p127 = scmp.eq.s32.totalorder %s18, 1
    %p128 = por %p126, %p127
    %p130 = scmp.ne.s32.totalorder %s113, %s129
    %p131 = scmp.eq.s32.totalorder %s18, 0
    %p132 = por %p130, %p131
    %s134 = sadd.s32 %s133, 1
    %p137 = scmp.eq.s32.totalorder %s12, 1
    %p138 = scmp.ne.s32.totalorder %s133, %s135
    %p139 = scmp.eq.s32.totalorder %s12, 0
    %p140 = por %p138, %p139
    %p141 = scmp.ne.s32.totalorder %s133, %s135
    %p142 = scmp.eq.s32.totalorder %s17, 1
    %p143 = por %p141, %p142
    %p144 = scmp.ne.s32.totalorder %s135, %s136
    %p145 = scmp.eq.s32.totalorder %s17, 0
    %p146 = por %p144, %p145
    %p147 = scmp.ne.s32.totalorder %s135, %s136
    %p148 = scmp.eq.s32.totalorder %s18, 1
    %p149 = por %p147, %p148
    %p151 = scmp.ne.s32.totalorder %s136, %s150
    %p152 = scmp.eq.s32.totalorder %s18, 0
    %p153 = por %p151, %p152
    %s154 = ssub.s32 %s19, %s31
    %s155 = ssub.s32 %s20, %s27
    %s156 = sor.u32 %s154, %s155
    %p157 = scmp.eq.s32.totalorder %s156, 0
    %s159 = sadd.s32 %s158, 1
    %s160 = scalar_select %p157, %s158, %s159
    %p163 = pneg %p157
    %p164 = scmp.eq.s32.totalorder %s12, 1
    %p165 = por %p163, %p164
    %p166 = scmp.ne.s32.totalorder %s158, %s161
    %p167 = scmp.eq.s32.totalorder %s12, 0
    %p168 = por %p166, %p167
    %p169 = scmp.ne.s32.totalorder %s158, %s161
    %p170 = scmp.eq.s32.totalorder %s17, 1
    %p171 = por %p169, %p170
    %p172 = scmp.ne.s32.totalorder %s161, %s162
    %p173 = scmp.eq.s32.totalorder %s17, 0
    %p174 = por %p172, %p173
    %p175 = scmp.ne.s32.totalorder %s161, %s162
    %p176 = scmp.eq.s32.totalorder %s18, 1
    %p177 = por %p175, %p176
    %p179 = scmp.ne.s32.totalorder %s162, %s178
    %p180 = scmp.eq.s32.totalorder %s18, 0
    %p181 = por %p179, %p180
    %p182 = scmp.le.s32.totalorder 1, %s12
    %p183 = scmp.lt.s32.totalorder %s12, 3
    %p184 = pnand %p182, %p183
    %p185 = pneg %p184
    // Predicated region
    $region9: #{samba_attention_forward.4} parent=5 // pred_check
      _
    $region10: #{samba_attention_forward.4} parent=5 // pred_check_branch
      %187 = sbr.rel (%p184) target = $region12
    $region11: #{samba_attention_forward.4} parent=5 // pred_region
      %s188 = ssub.s32 %s12, 1
      // Predicated region
      $region13: #{samba_attention_forward.4} parent=11 // pred_check
        %p189 = pneg %p45
      $region14: #{samba_attention_forward.4} parent=11 // pred_check_branch
        %191 = sbr.rel (%p189) target = $region16
      $region15: #{samba_attention_forward.4} parent=11 // pred_region
        _
      $region16: #{samba_attention_forward.4} parent=11 // pred_fallthru
        _
      // Predicated region
      $region17: #{samba_attention_forward.4} parent=11 // pred_check
        %p192 = pneg %p146
      $region18: #{samba_attention_forward.4} parent=11 // pred_check_branch
        %194 = sbr.rel (%p192) target = $region20
      $region19: #{samba_attention_forward.4} parent=11 // pred_region
        _
      $region20: #{samba_attention_forward.4} parent=11 // pred_fallthru
        _
    $region12: #{samba_attention_forward.4} parent=5 // pred_fallthru
      _
    %p195 = scmp.lt.s32.totalorder %s12, 2
    // Predicated region
    $region21: #{samba_attention_forward.4} parent=5 // pred_check
      %p196 = pneg %p195
    $region22: #{samba_attention_forward.4} parent=5 // pred_check_branch
      %198 = sbr.rel (%p196) target = $region24
    $region23: #{samba_attention_forward.4} parent=5 // pred_region
      // Predicated region
      $region25: #{samba_attention_forward.4} parent=23 // pred_check
        %p199 = pneg %p67
      $region26: #{samba_attention_forward.4} parent=23 // pred_check_branch
        %201 = sbr.rel (%p199) target = $region28
      $region27: #{samba_attention_forward.4} parent=23 // pred_region
        %s202 = smul.u32 2, %s20
        %p203 = scmp.lt.s32.totalorder %s19, 1
        %s204 = scalar_select %p203, %s19, 1
        %p205 = scmp.lt.s32.totalorder %s202, 1
        %s206 = scalar_select %p205, %s202, 1
        %s207 = smul.addr %s204, 2
        %s208 = sadd.s32 %s206, %s207
        %s209 = smul.addr %s208, 4
        %s210 = scalar_lea.vmem %s1, %s209
        %s211 = smul.u32 2, %s20
      $region28: #{samba_attention_forward.4} parent=23 // pred_fallthru
        _
      // Predicated region
      $region29: #{samba_attention_forward.4} parent=23 // pred_check
        %p212 = pneg %p93
      $region30: #{samba_attention_forward.4} parent=23 // pred_check_branch
        %214 = sbr.rel (%p212) target = $region32
      $region31: #{samba_attention_forward.4} parent=23 // pred_region
        %p215 = scmp.lt.s32.totalorder %s19, 1
        %s216 = scalar_select %p215, %s19, 1
        %s217 = smul.addr %s216, 2
        %s218 = smul.addr %s217, 4
        %s219 = scalar_lea.vmem %s2, %s218
      $region32: #{samba_attention_forward.4} parent=23 // pred_fallthru
        _
      // Predicated region
      $region33: #{samba_attention_forward.4} parent=23 // pred_check
        %p220 = pneg %p119
      $region34: #{samba_attention_forward.4} parent=23 // pred_check_branch
        %222 = sbr.rel (%p220) target = $region36
      $region35: #{samba_attention_forward.4} parent=23 // pred_region
        %p223 = scmp.lt.s32.totalorder %s19, 1
        %s224 = scalar_select %p223, %s19, 1
        %s225 = smul.addr %s224, 2
        %s226 = smul.addr %s225, 4
        %s227 = scalar_lea.vmem %s3, %s226
      $region36: #{samba_attention_forward.4} parent=23 // pred_fallthru
        _
    $region24: #{samba_attention_forward.4} parent=5 // pred_fallthru
      _
    %p228 = scmp.le.s32.totalorder 1, %s12
    %p229 = scmp.lt.s32.totalorder %s12, 3
    %p230 = pnand %p228, %p229
    %p231 = pneg %p230
    // Predicated region
    $region37: #{samba_attention_forward.4} parent=5 // pred_check
      _
    $region38: #{samba_attention_forward.4} parent=5 // pred_check_branch
      %233 = sbr.rel (%p230) target = $region40
    $region39: #{samba_attention_forward.4} parent=5 // pred_region
      %s234 = ssub.s32 %s12, 1
      %p235 = pneg %p45
      %p236 = pneg %p42
      %s237 = smul.u32 2, %s22
      %p238 = scmp.lt.s32.totalorder %s21, 1
      %s239 = scalar_select %p238, %s21, 1
      %p240 = scmp.lt.s32.totalorder %s237, 1
      %s241 = scalar_select %p240, %s237, 1
      %s242 = smul.addr %s239, 2
      %s243 = sadd.s32 %s241, %s242
      %s244 = smul.addr %s243, 4
      %s245 = scalar_lea.vmem %s1, %s244
      %p246 = pneg %p73
      %p247 = pneg %p70
      %p248 = scmp.lt.s32.totalorder %s21, 1
      %s249 = scalar_select %p248, %s21, 1
      %s250 = smul.addr %s249, 2
      %s251 = smul.addr %s250, 4
      %s252 = scalar_lea.vmem %s2, %s251
      %p253 = pneg %p99
      %p254 = pneg %p96
      %p255 = scmp.lt.s32.totalorder %s21, 1
      %s256 = scalar_select %p255, %s21, 1
      %s257 = smul.addr %s256, 2
      %s258 = smul.addr %s257, 4
      %s259 = scalar_lea.vmem %s3, %s258
      %p260 = pneg %p125
      %p261 = pneg %p122
      %p262 = pneg %p146
      %p263 = pneg %p143
      %p264 = pneg %p174
      %p265 = pneg %p171
      %s266 = smul.u32 2, %s22
      %p267 = scmp.lt.s32.totalorder %s21, 1
      %s268 = scalar_select %p267, %s21, 1
      %p269 = scmp.lt.s32.totalorder %s266, 1
      %s270 = scalar_select %p269, %s266, 1
      %s271 = smul.addr %s268, 2
      %s272 = sadd.s32 %s270, %s271
      %s273 = smul.addr %s272, 4
      %s274 = scalar_lea.vmem %s5, %s273
      %s275 = smul.u32 2, %s22
      %p276 = scmp.lt.s32.totalorder %s21, 1
      %s277 = scalar_select %p276, %s21, 1
      %p278 = scmp.lt.s32.totalorder %s275, 1
      %s279 = scalar_select %p278, %s275, 1
      %s280 = smul.addr %s277, 2
      %s281 = sadd.s32 %s279, %s280
      %s282 = smul.addr %s281, 4
      %s283 = scalar_lea.vmem %s1, %s282
      %s284 = smul.u32 2, %s22
      %p285 = scmp.lt.s32.totalorder %s21, 1
      %s286 = scalar_select %p285, %s21, 1
      %s287 = smul.addr %s286, 2
      %s288 = smul.addr %s287, 4
      %s289 = scalar_lea.vmem %s2, %s288
      %p290 = scmp.lt.s32.totalorder %s21, 1
      %s291 = scalar_select %p290, %s21, 1
      %s292 = smul.addr %s291, 2
      %s293 = smul.addr %s292, 4
      %s294 = scalar_lea.vmem %s3, %s293
      %s295 = smul.u32 2, %s22
      %p296 = scmp.lt.s32.totalorder %s21, 1
      %s297 = scalar_select %p296, %s21, 1
      %p298 = scmp.lt.s32.totalorder %s295, 1
      %s299 = scalar_select %p298, %s295, 1
      %s300 = smul.addr %s297, 2
      %s301 = sadd.s32 %s299, %s300
      %s302 = smul.addr %s301, 4
      %s303 = scalar_lea.vmem %s5, %s302
      %s304 = smul.u32 2, %s22
      %v307 = vld [vmem:[%s283] sm:$0xf]
      %v308 = vld [vmem:[%s283 + $0x4] sm:$0xf]
      %v309 = vmul.bf16 %v307, 1048592000
      %v310 = vmul.bf16 %v308, 1048592000
      %s311 = sld [smem:[#allocation2]]
      %s312 = smul.u32 %s22, 16
      %v313 = vlaneseq
      %v314 = vshrl.u32 %v313, 7
      %v315 = vadd.s32 %v314, 8
      %v316 = vstv %s312
      %v317 = vadd.s32 %v316, %v314
      %v318 = vadd.s32 %v316, %v315
      %v319 = vlaneseq
      %v320 = vand.u32 %v319, 127
      %v321 = vadd.s32 %v316, %v320
      %vm322 = vcmp.le.s32.totalorder %v321, %v317
      %vm323 = vcmp.le.s32.totalorder %v321, %v318
      // While loop
      $region41: #{samba_attention_forward.4} parent=39 // loop_pre_header
        _
      $region42: #{samba_attention_forward.4} parent=39 // loop_header
        %s325 = sphi 0, %s327
        %p326 = scmp.ge.s32.totalorder %s325, %s22
        %v330 = vphi -inf, %v417
        %v331 = vphi -inf, %v418
        %v332 = vphi 0.0, %v439
        %v333 = vphi 0.0, %v440
        %v334 = vphi 0.0, %v494
        %v335 = vphi 0.0, %v495
        %v336 = vphi -inf, %v553
        %v337 = vphi -inf, %v554
        %v338 = vphi 0.0, %v575
        %v339 = vphi 0.0, %v576
        %v340 = vphi 0.0, %v624
        %v341 = vphi 0.0, %v625
      $region43: #{samba_attention_forward.4} parent=39 // loop_header_branch
        %329 = sbr.rel (%p326) target = $region47
      $region44: #{samba_attention_forward.4} parent=39 // loop_body
        %s342 = smul.u32 %s325, 16
        %s343 = sshra.s32 %s342, 3
        %s344 = sand.u32 %s342, 7
        %s345 = smul.addr %s343, 4
        %s346 = scalar_lea.vmem %s294, %s345
        %v347 = vld [vmem:[%s346] sm:$0xf]
        %v348 = vld [vmem:[%s346 + $0x4] sm:$0xf]
        %s349 = smul.addr %s343, 4
        %s350 = scalar_lea.vmem %s289, %s349
        %v351 = vld [vmem:[%s350] sm:$0xf]
        %v352 = vld [vmem:[%s350 + $0x4] sm:$0xf]
        %v355 = vunpack.c.l.b16 %v309
        %v356 = vunpack.c.l.b16 %v310
        %v357 = vpack.c.b16 %v356, %v355
        %v360 = vunpack.c.l.b16 %v351
        %v361 = vunpack.c.l.b16 %v352
        %v362 = vpack.c.b16 %v361, %v360
        %vm363 = vcmask 130048
        %v365 = vsel %vm363, %v357, 0
        %v368 = vsel %vm363, %v362, 0
        %370 = vmatprep.subr.bf16.mxu0 0
        %371 = vmatpush1.bf16.xpose.msra.mxu0 %v368
        %372 = vmatprep.subr.bf16.mxu0 0
        %373 = vmatpush1.bf16.xpose.msra.mxu0 0
        %374 = vmatprep.subr.bf16.mxu0 0
        %375 = vmatpush1.bf16.xpose.msra.mxu0 0
        %376 = vmatprep.subr.bf16.mxu0 0
        %377 = vmatpush1.bf16.xpose.msra.mxu0 0
        %378 = vmatprep.subr.bf16.mxu0 0
        %379 = vmatpush1.bf16.xpose.msra.mxu0 0
        %380 = vmatprep.subr.bf16.mxu0 0
        %381 = vmatpush1.bf16.xpose.msra.mxu0 0
        %382 = vmatprep.subr.bf16.mxu0 0
        %383 = vmatpush1.bf16.xpose.msra.mxu0 0
        %384 = vmatprep.subr.bf16.mxu0 0
        %385 = vmatpush1.bf16.xpose.msra.mxu0 0
        %386 = vmatprep.subr.bf16.mxu0 0
        %387 = vmatpush1.bf16.xpose.msra.mxu0 0
        %388 = vmatprep.subr.bf16.mxu0 0
        %389 = vmatpush1.bf16.xpose.msra.mxu0 0
        %390 = vmatprep.subr.bf16.mxu0 0
        %391 = vmatpush1.bf16.xpose.msra.mxu0 0
        %392 = vmatprep.subr.bf16.mxu0 0
        %393 = vmatpush1.bf16.xpose.msra.mxu0 0
        %394 = vmatprep.subr.bf16.mxu0 0
        %395 = vmatpush1.bf16.xpose.msra.mxu0 0
        %396 = vmatprep.subr.bf16.mxu0 0
        %397 = vmatpush1.bf16.xpose.msra.mxu0 0
        %398 = vmatprep.subr.bf16.mxu0 0
        %399 = vmatpush1.bf16.xpose.msra.mxu0 0
        %400 = vmatprep.subr.bf16.mxu0 0
        %401 = vmatpush1.bf16.xpose.msra.mxu0 0
        %402 = vmatprep.mubr.bf16.mxu0 0
        %403 = vmatmul.mubr.bf16.gmra.mrb[0].mxu0 %v365
        %v404 = vpop.f32.mrb[0].mxu0
        %v405 = vadd.f32 0.0, %v404
        %v406 = vpop.f32.mrb[0].mxu0
        %v407 = vpop.f32.mrb[0].mxu0
        %v408 = vadd.f32 0.0, %v407
        %v409 = vpop.f32.mrb[0].mxu0
        %410 = vdwg.mxu0
        %v411 = vsel %vm363, %v405, -inf
        %412 = vmax.xlane.f32.xlu0 %v411
        %v413 = vpop.xlane.xlu0 %412
        %v414 = vsel %vm363, %v408, -inf
        %415 = vmax.xlane.f32.xlu0 %v414
        %v416 = vpop.xlane.xlu0 %415
        %v417 = vmax.f32 %v330, %v413
        %v418 = vmax.f32 %v331, %v416
        %v419 = vsub.f32 %v330, %v417
        %v420 = vsub.f32 %v331, %v418
        %v421 = vmul.f32 %v419, 1.442695
        %v422 = vpow.pop %v421
        %v423 = vmul.f32 %v420, 1.442695
        %v424 = vpow.pop %v423
        %v425 = vsub.f32 %v405, %v417
        %v426 = vsub.f32 %v408, %v418
        %v427 = vmul.f32 %v425, 1.442695
        %v428 = vpow.pop %v427
        %v429 = vmul.f32 %v426, 1.442695
        %v430 = vpow.pop %v429
        %v431 = vmul.f32 %v422, %v332
        %v432 = vmul.f32 %v424, %v333
        %v433 = vsel %vm363, %v428, 0.0
        %434 = vadd.xlane.f32.xlu0 %v433
        %v435 = vpop.xlane.xlu0 %434
        %v436 = vsel %vm363, %v430, 0.0
        %437 = vadd.xlane.f32.xlu0 %v436
        %v438 = vpop.xlane.xlu0 %437
        %v439 = vadd.f32 %v431, %v435
        %v440 = vadd.f32 %v432, %v438
        %v441 = vmul.f32 %v422, %v334
        %v442 = vmul.f32 %v424, %v335
        %v443 = vpack.c.bf16 %v430, %v428
        %v446 = vunpack.c.l.b16 %v347
        %v447 = vunpack.c.l.b16 %v348
        %v448 = vpack.c.b16 %v447, %v446
        %v451 = vsel %vm363, %v443, 0
        %453 = vmatprep.subr.bf16.mxu0 0
        %454 = vmatpush1.bf16.msra.mxu0 %v448
        %455 = vmatprep.subr.bf16.mxu0 0
        %456 = vmatpush1.bf16.msra.mxu0 0
        %457 = vmatprep.subr.bf16.mxu0 0
        %458 = vmatpush1.bf16.msra.mxu0 0
        %459 = vmatprep.subr.bf16.mxu0 0
        %460 = vmatpush1.bf16.msra.mxu0 0
        %461 = vmatprep.subr.bf16.mxu0 0
        %462 = vmatpush1.bf16.msra.mxu0 0
        %463 = vmatprep.subr.bf16.mxu0 0
        %464 = vmatpush1.bf16.msra.mxu0 0
        %465 = vmatprep.subr.bf16.mxu0 0
        %466 = vmatpush1.bf16.msra.mxu0 0
        %467 = vmatprep.subr.bf16.mxu0 0
        %468 = vmatpush1.bf16.msra.mxu0 0
        %469 = vmatprep.subr.bf16.mxu0 0
        %470 = vmatpush1.bf16.msra.mxu0 0
        %471 = vmatprep.subr.bf16.mxu0 0
        %472 = vmatpush1.bf16.msra.mxu0 0
        %473 = vmatprep.subr.bf16.mxu0 0
        %474 = vmatpush1.bf16.msra.mxu0 0
        %475 = vmatprep.subr.bf16.mxu0 0
        %476 = vmatpush1.bf16.msra.mxu0 0
        %477 = vmatprep.subr.bf16.mxu0 0
        %478 = vmatpush1.bf16.msra.mxu0 0
        %479 = vmatprep.subr.bf16.mxu0 0
        %480 = vmatpush1.bf16.msra.mxu0 0
        %481 = vmatprep.subr.bf16.mxu0 0
        %482 = vmatpush1.bf16.msra.mxu0 0
        %483 = vmatprep.subr.bf16.mxu0 0
        %484 = vmatpush1.bf16.msra.mxu0 0
        %485 = vmatprep.mubr.bf16.mxu0 0
        %486 = vmatmul.mubr.bf16.gmra.mrb[0].mxu0 %v451
        %v487 = vpop.f32.mrb[0].mxu0
        %v488 = vadd.f32 0.0, %v487
        %v489 = vpop.f32.mrb[0].mxu0
        %v490 = vpop.f32.mrb[0].mxu0
        %v491 = vadd.f32 0.0, %v490
        %v492 = vpop.f32.mrb[0].mxu0
        %493 = vdwg.mxu0
        %v494 = vadd.f32 %v441, %v488
        %v495 = vadd.f32 %v442, %v491
        %496 = vrot.lane.b32.xlu0 %v357, 112
        %v497 = vpop.permute.xlu0 %496
        %498 = vrot.lane.b32.xlu0 %v362, 112
        %v499 = vpop.permute.xlu0 %498
        %v501 = vsel %vm363, %v497, 0
        %v504 = vsel %vm363, %v499, 0
        %506 = vmatprep.subr.bf16.mxu0 0
        %507 = vmatpush1.bf16.xpose.msra.mxu0 %v504
        %508 = vmatprep.subr.bf16.mxu0 0
        %509 = vmatpush1.bf16.xpose.msra.mxu0 0
        %510 = vmatprep.subr.bf16.mxu0 0
        %511 = vmatpush1.bf16.xpose.msra.mxu0 0
        %512 = vmatprep.subr.bf16.mxu0 0
        %513 = vmatpush1.bf16.xpose.msra.mxu0 0
        %514 = vmatprep.subr.bf16.mxu0 0
        %515 = vmatpush1.bf16.xpose.msra.mxu0 0
        %516 = vmatprep.subr.bf16.mxu0 0
        %517 = vmatpush1.bf16.xpose.msra.mxu0 0
        %518 = vmatprep.subr.bf16.mxu0 0
        %519 = vmatpush1.bf16.xpose.msra.mxu0 0
        %520 = vmatprep.subr.bf16.mxu0 0
        %521 = vmatpush1.bf16.xpose.msra.mxu0 0
        %522 = vmatprep.subr.bf16.mxu0 0
        %523 = vmatpush1.bf16.xpose.msra.mxu0 0
        %524 = vmatprep.subr.bf16.mxu0 0
        %525 = vmatpush1.bf16.xpose.msra.mxu0 0
        %526 = vmatprep.subr.bf16.mxu0 0
        %527 = vmatpush1.bf16.xpose.msra.mxu0 0
        %528 = vmatprep.subr.bf16.mxu0 0
        %529 = vmatpush1.bf16.xpose.msra.mxu0 0
        %530 = vmatprep.subr.bf16.mxu0 0
        %531 = vmatpush1.bf16.xpose.msra.mxu0 0
        %532 = vmatprep.subr.bf16.mxu0 0
        %533 = vmatpush1.bf16.xpose.msra.mxu0 0
        %534 = vmatprep.subr.bf16.mxu0 0
        %535 = vmatpush1.bf16.xpose.msra.mxu0 0
        %536 = vmatprep.subr.bf16.mxu0 0
        %537 = vmatpush1.bf16.xpose.msra.mxu0 0
        %538 = vmatprep.mubr.bf16.mxu0 0
        %539 = vmatmul.mubr.bf16.gmra.mrb[0].mxu0 %v501
        %v540 = vpop.f32.mrb[0].mxu0
        %v541 = vadd.f32 0.0, %v540
        %v542 = vpop.f32.mrb[0].mxu0
        %v543 = vpop.f32.mrb[0].mxu0
        %v544 = vadd.f32 0.0, %v543
        %v545 = vpop.f32.mrb[0].mxu0
        %546 = vdwg.mxu0
        %v547 = vsel %vm363, %v541, -inf
        %548 = vmax.xlane.f32.xlu0 %v547
        %v549 = vpop.xlane.xlu0 %548
        %v550 = vsel %vm363, %v544, -inf
        %551 = vmax.xlane.f32.xlu0 %v550
        %v552 = vpop.xlane.xlu0 %551
        %v553 = vmax.f32 %v336, %v549
        %v554 = vmax.f32 %v337, %v552
        %v555 = vsub.f32 %v336, %v553
        %v556 = vsub.f32 %v337, %v554
        %v557 = vmul.f32 %v555, 1.442695
        %v558 = vpow.pop %v557
        %v559 = vmul.f32 %v556, 1.442695
        %v560 = vpow.pop %v559
        %v561 = vsub.f32 %v541, %v553
        %v562 = vsub.f32 %v544, %v554
        %v563 = vmul.f32 %v561, 1.442695
        %v564 = vpow.pop %v563
        %v565 = vmul.f32 %v562, 1.442695
        %v566 = vpow.pop %v565
        %v567 = vmul.f32 %v558, %v338
        %v568 = vmul.f32 %v560, %v339
        %v569 = vsel %vm363, %v564, 0.0
        %570 = vadd.xlane.f32.xlu0 %v569
        %v571 = vpop.xlane.xlu0 %570
        %v572 = vsel %vm363, %v566, 0.0
        %573 = vadd.xlane.f32.xlu0 %v572
        %v574 = vpop.xlane.xlu0 %573
        %v575 = vadd.f32 %v567, %v571
        %v576 = vadd.f32 %v568, %v574
        %v577 = vmul.f32 %v558, %v340
        %v578 = vmul.f32 %v560, %v341
        %v579 = vpack.c.bf16 %v566, %v564
        %v581 = vsel %vm363, %v579, 0
        %583 = vmatprep.subr.bf16.mxu0 0
        %584 = vmatpush1.bf16.msra.mxu0 %v448
        %585 = vmatprep.subr.bf16.mxu0 0
        %586 = vmatpush1.bf16.msra.mxu0 0
        %587 = vmatprep.subr.bf16.mxu0 0
        %588 = vmatpush1.bf16.msra.mxu0 0
        %589 = vmatprep.subr.bf16.mxu0 0
        %590 = vmatpush1.bf16.msra.mxu0 0
        %591 = vmatprep.subr.bf16.mxu0 0
        %592 = vmatpush1.bf16.msra.mxu0 0
        %593 = vmatprep.subr.bf16.mxu0 0
        %594 = vmatpush1.bf16.msra.mxu0 0
        %595 = vmatprep.subr.bf16.mxu0 0
        %596 = vmatpush1.bf16.msra.mxu0 0
        %597 = vmatprep.subr.bf16.mxu0 0
        %598 = vmatpush1.bf16.msra.mxu0 0
        %599 = vmatprep.subr.bf16.mxu0 0
        %600 = vmatpush1.bf16.msra.mxu0 0
        %601 = vmatprep.subr.bf16.mxu0 0
        %602 = vmatpush1.bf16.msra.mxu0 0
        %603 = vmatprep.subr.bf16.mxu0 0
        %604 = vmatpush1.bf16.msra.mxu0 0
        %605 = vmatprep.subr.bf16.mxu0 0
        %606 = vmatpush1.bf16.msra.mxu0 0
        %607 = vmatprep.subr.bf16.mxu0 0
        %608 = vmatpush1.bf16.msra.mxu0 0
        %609 = vmatprep.subr.bf16.mxu0 0
        %610 = vmatpush1.bf16.msra.mxu0 0
        %611 = vmatprep.subr.bf16.mxu0 0
        %612 = vmatpush1.bf16.msra.mxu0 0
        %613 = vmatprep.subr.bf16.mxu0 0
        %614 = vmatpush1.bf16.msra.mxu0 0
        %615 = vmatprep.mubr.bf16.mxu0 0
        %616 = vmatmul.mubr.bf16.gmra.mrb[0].mxu0 %v581
        %v617 = vpop.f32.mrb[0].mxu0
        %v618 = vadd.f32 0.0, %v617
        %v619 = vpop.f32.mrb[0].mxu0
        %v620 = vpop.f32.mrb[0].mxu0
        %v621 = vadd.f32 0.0, %v620
        %v622 = vpop.f32.mrb[0].mxu0
        %623 = vdwg.mxu0
        %v624 = vadd.f32 %v577, %v618
        %v625 = vadd.f32 %v578, %v621
      $region45: #{samba_attention_forward.4} parent=39 // loop_footer
        %s327 = sadd.s32 %s325, 1
      $region46: #{samba_attention_forward.4} parent=39 // loop_footer_branch
        %324 = sbr.rel target = $region42
      $region47: #{samba_attention_forward.4} parent=39 // loop_exit
        _
      %s626 = sshra.s32 %s312, 3
      %s627 = sand.u32 %s312, 7
      %s628 = smul.addr %s626, 4
      %s629 = scalar_lea.vmem %s294, %s628
      %v630 = vld [vmem:[%s629] sm:$0xf]
      %v631 = vld [vmem:[%s629 + $0x4] sm:$0xf]
      %s632 = smul.addr %s626, 4
      %s633 = scalar_lea.vmem %s289, %s632
      %v634 = vld [vmem:[%s633] sm:$0xf]
      %v635 = vld [vmem:[%s633 + $0x4] sm:$0xf]
      %v638 = vunpack.c.l.b16 %v309
      %v639 = vunpack.c.l.b16 %v310
      %v640 = vpack.c.b16 %v639, %v638
      %v643 = vunpack.c.l.b16 %v634
      %v644 = vunpack.c.l.b16 %v635
      %v645 = vpack.c.b16 %v644, %v643
      %vm646 = vcmask 130048
      %v648 = vsel %vm646, %v640, 0
      %v651 = vsel %vm646, %v645, 0
      %653 = vmatprep.subr.bf16.mxu0 0
      %654 = vmatpush1.bf16.xpose.msra.mxu0 %v651
      %655 = vmatprep.subr.bf16.mxu0 0
      %656 = vmatpush1.bf16.xpose.msra.mxu0 0
      %657 = vmatprep.subr.bf16.mxu0 0
      %658 = vmatpush1.bf16.xpose.msra.mxu0 0
      %659 = vmatprep.subr.bf16.mxu0 0
      %660 = vmatpush1.bf16.xpose.msra.mxu0 0
      %661 = vmatprep.subr.bf16.mxu0 0
      %662 = vmatpush1.bf16.xpose.msra.mxu0 0
      %663 = vmatprep.subr.bf16.mxu0 0
      %664 = vmatpush1.bf16.xpose.msra.mxu0 0
      %665 = vmatprep.subr.bf16.mxu0 0
      %666 = vmatpush1.bf16.xpose.msra.mxu0 0
      %667 = vmatprep.subr.bf16.mxu0 0
      %668 = vmatpush1.bf16.xpose.msra.mxu0 0
      %669 = vmatprep.subr.bf16.mxu0 0
      %670 = vmatpush1.bf16.xpose.msra.mxu0 0
      %671 = vmatprep.subr.bf16.mxu0 0
      %672 = vmatpush1.bf16.xpose.msra.mxu0 0
      %673 = vmatprep.subr.bf16.mxu0 0
      %674 = vmatpush1.bf16.xpose.msra.mxu0 0
      %675 = vmatprep.subr.bf16.mxu0 0
      %676 = vmatpush1.bf16.xpose.msra.mxu0 0
      %677 = vmatprep.subr.bf16.mxu0 0
      %678 = vmatpush1.bf16.xpose.msra.mxu0 0
      %679 = vmatprep.subr.bf16.mxu0 0
      %680 = vmatpush1.bf16.xpose.msra.mxu0 0
      %681 = vmatprep.subr.bf16.mxu0 0
      %682 = vmatpush1.bf16.xpose.msra.mxu0 0
      %683 = vmatprep.subr.bf16.mxu0 0
      %684 = vmatpush1.bf16.xpose.msra.mxu0 0
      %685 = vmatprep.mubr.bf16.mxu0 0
      %686 = vmatmul.mubr.bf16.gmra.mrb[0].mxu0 %v648
      %v687 = vpop.f32.mrb[0].mxu0
      %v688 = vadd.f32 0.0, %v687
      %v689 = vpop.f32.mrb[0].mxu0
      %v690 = vpop.f32.mrb[0].mxu0
      %v691 = vadd.f32 0.0, %v690
      %v692 = vpop.f32.mrb[0].mxu0
      %693 = vdwg.mxu0
      %v694 = vsel %vm322, %v688, -inf
      %v695 = vsel %vm323, %v691, -inf
      %v696 = vsel %vm646, %v694, -inf
      %697 = vmax.xlane.f32.xlu0 %v696
      %v698 = vpop.xlane.xlu0 %697
      %v699 = vsel %vm646, %v695, -inf
      %700 = vmax.xlane.f32.xlu0 %v699
      %v701 = vpop.xlane.xlu0 %700
      %v702 = vmax.f32 %v330, %v698
      %v703 = vmax.f32 %v331, %v701
      %v704 = vsub.f32 %v330, %v702
      %v705 = vsub.f32 %v331, %v703
      %v706 = vmul.f32 %v704, 1.442695
      %v707 = vpow.pop %v706
      %v708 = vmul.f32 %v705, 1.442695
      %v709 = vpow.pop %v708
      %v710 = vsub.f32 %v694, %v702
      %v711 = vsub.f32 %v695, %v703
      %v712 = vmul.f32 %v710, 1.442695
      %v713 = vpow.pop %v712
      %v714 = vmul.f32 %v711, 1.442695
      %v715 = vpow.pop %v714
      %v716 = vmul.f32 %v707, %v332
      %v717 = vmul.f32 %v709, %v333
      %v718 = vsel %vm646, %v713, 0.0
      %719 = vadd.xlane.f32.xlu0 %v718
      %v720 = vpop.xlane.xlu0 %719
      %v721 = vsel %vm646, %v715, 0.0
      %722 = vadd.xlane.f32.xlu0 %v721
      %v723 = vpop.xlane.xlu0 %722
      %v724 = vadd.f32 %v716, %v720
      %v725 = vadd.f32 %v717, %v723
      %v726 = vmul.f32 %v707, %v334
      %v727 = vmul.f32 %v709, %v335
      %v728 = vpack.c.bf16 %v715, %v713
      %v731 = vunpack.c.l.b16 %v630
      %v732 = vunpack.c.l.b16 %v631
      %v733 = vpack.c.b16 %v732, %v731
      %v736 = vsel %vm646, %v728, 0
      %738 = vmatprep.subr.bf16.mxu0 0
      %739 = vmatpush1.bf16.msra.mxu0 %v733
      %740 = vmatprep.subr.bf16.mxu0 0
      %741 = vmatpush1.bf16.msra.mxu0 0
      %742 = vmatprep.subr.bf16.mxu0 0
      %743 = vmatpush1.bf16.msra.mxu0 0
      %744 = vmatprep.subr.bf16.mxu0 0
      %745 = vmatpush1.bf16.msra.mxu0 0
      %746 = vmatprep.subr.bf16.mxu0 0
      %747 = vmatpush1.bf16.msra.mxu0 0
      %748 = vmatprep.subr.bf16.mxu0 0
      %749 = vmatpush1.bf16.msra.mxu0 0
      %750 = vmatprep.subr.bf16.mxu0 0
      %751 = vmatpush1.bf16.msra.mxu0 0
      %752 = vmatprep.subr.bf16.mxu0 0
      %753 = vmatpush1.bf16.msra.mxu0 0
      %754 = vmatprep.subr.bf16.mxu0 0
      %755 = vmatpush1.bf16.msra.mxu0 0
      %756 = vmatprep.subr.bf16.mxu0 0
      %757 = vmatpush1.bf16.msra.mxu0 0
      %758 = vmatprep.subr.bf16.mxu0 0
      %759 = vmatpush1.bf16.msra.mxu0 0
      %760 = vmatprep.subr.bf16.mxu0 0
      %761 = vmatpush1.bf16.msra.mxu0 0
      %762 = vmatprep.subr.bf16.mxu0 0
      %763 = vmatpush1.bf16.msra.mxu0 0
      %764 = vmatprep.subr.bf16.mxu0 0
      %765 = vmatpush1.bf16.msra.mxu0 0
      %766 = vmatprep.subr.bf16.mxu0 0
      %767 = vmatpush1.bf16.msra.mxu0 0
      %768 = vmatprep.subr.bf16.mxu0 0
      %769 = vmatpush1.bf16.msra.mxu0 0
      %770 = vmatprep.mubr.bf16.mxu0 0
      %771 = vmatmul.mubr.bf16.gmra.mrb[0].mxu0 %v736
      %v772 = vpop.f32.mrb[0].mxu0
      %v773 = vadd.f32 0.0, %v772
      %v774 = vpop.f32.mrb[0].mxu0
      %v775 = vpop.f32.mrb[0].mxu0
      %v776 = vadd.f32 0.0, %v775
      %v777 = vpop.f32.mrb[0].mxu0
      %778 = vdwg.mxu0
      %v779 = vadd.f32 %v726, %v773
      %v780 = vadd.f32 %v727, %v776
      %781 = vrot.lane.b32.xlu0 %v640, 112
      %v782 = vpop.permute.xlu0 %781
      %783 = vrot.lane.b32.xlu0 %v645, 112
      %v784 = vpop.permute.xlu0 %783
      %v786 = vsel %vm646, %v782, 0
      %v789 = vsel %vm646, %v784, 0
      %791 = vmatprep.subr.bf16.mxu0 0
      %792 = vmatpush1.bf16.xpose.msra.mxu0 %v789
      %793 = vmatprep.subr.bf16.mxu0 0
      %794 = vmatpush1.bf16.xpose.msra.mxu0 0
      %795 = vmatprep.subr.bf16.mxu0 0
      %796 = vmatpush1.bf16.xpose.msra.mxu0 0
      %797 = vmatprep.subr.bf16.mxu0 0
      %798 = vmatpush1.bf16.xpose.msra.mxu0 0
      %799 = vmatprep.subr.bf16.mxu0 0
      %800 = vmatpush1.bf16.xpose.msra.mxu0 0
      %801 = vmatprep.subr.bf16.mxu0 0
      %802 = vmatpush1.bf16.xpose.msra.mxu0 0
      %803 = vmatprep.subr.bf16.mxu0 0
      %804 = vmatpush1.bf16.xpose.msra.mxu0 0
      %805 = vmatprep.subr.bf16.mxu0 0
      %806 = vmatpush1.bf16.xpose.msra.mxu0 0
      %807 = vmatprep.subr.bf16.mxu0 0
      %808 = vmatpush1.bf16.xpose.msra.mxu0 0
      %809 = vmatprep.subr.bf16.mxu0 0
      %810 = vmatpush1.bf16.xpose.msra.mxu0 0
      %811 = vmatprep.subr.bf16.mxu0 0
      %812 = vmatpush1.bf16.xpose.msra.mxu0 0
      %813 = vmatprep.subr.bf16.mxu0 0
      %814 = vmatpush1.bf16.xpose.msra.mxu0 0
      %815 = vmatprep.subr.bf16.mxu0 0
      %816 = vmatpush1.bf16.xpose.msra.mxu0 0
      %817 = vmatprep.subr.bf16.mxu0 0
      %818 = vmatpush1.bf16.xpose.msra.mxu0 0
      %819 = vmatprep.subr.bf16.mxu0 0
      %820 = vmatpush1.bf16.xpose.msra.mxu0 0
      %821 = vmatprep.subr.bf16.mxu0 0
      %822 = vmatpush1.bf16.xpose.msra.mxu0 0
      %823 = vmatprep.mubr.bf16.mxu0 0
      %824 = vmatmul.mubr.bf16.gmra.mrb[0].mxu0 %v786
      %v825 = vpop.f32.mrb[0].mxu0
      %v826 = vadd.f32 0.0, %v825
      %v827 = vpop.f32.mrb[0].mxu0
      %v828 = vpop.f32.mrb[0].mxu0
      %v829 = vadd.f32 0.0, %v828
      %v830 = vpop.f32.mrb[0].mxu0
      %831 = vdwg.mxu0
      %v832 = vsel %vm322, %v826, -inf
      %v833 = vsel %vm323, %v829, -inf
      %v834 = vsel %vm646, %v832, -inf
      %835 = vmax.xlane.f32.xlu0 %v834
      %v836 = vpop.xlane.xlu0 %835
      %v837 = vsel %vm646, %v833, -inf
      %838 = vmax.xlane.f32.xlu0 %v837
      %v839 = vpop.xlane.xlu0 %838
      %v840 = vmax.f32 %v336, %v836
      %v841 = vmax.f32 %v337, %v839
      %v842 = vsub.f32 %v336, %v840
      %v843 = vsub.f32 %v337, %v841
      %v844 = vmul.f32 %v842, 1.442695
      %v845 = vpow.pop %v844
      %v846 = vmul.f32 %v843, 1.442695
      %v847 = vpow.pop %v846
      %v848 = vsub.f32 %v832, %v840
      %v849 = vsub.f32 %v833, %v841
      %v850 = vmul.f32 %v848, 1.442695
      %v851 = vpow.pop %v850
      %v852 = vmul.f32 %v849, 1.442695
      %v853 = vpow.pop %v852
      %v854 = vmul.f32 %v845, %v338
      %v855 = vmul.f32 %v847, %v339
      %v856 = vsel %vm646, %v851, 0.0
      %857 = vadd.xlane.f32.xlu0 %v856
      %v858 = vpop.xlane.xlu0 %857
      %v859 = vsel %vm646, %v853, 0.0
      %860 = vadd.xlane.f32.xlu0 %v859
      %v861 = vpop.xlane.xlu0 %860
      %v862 = vadd.f32 %v854, %v858
      %v863 = vadd.f32 %v855, %v861
      %v864 = vmul.f32 %v845, %v340
      %v865 = vmul.f32 %v847, %v341
      %v866 = vpack.c.bf16 %v853, %v851
      %v868 = vsel %vm646, %v866, 0
      %870 = vmatprep.subr.bf16.mxu0 0
      %871 = vmatpush1.bf16.msra.mxu0 %v733
      %872 = vmatprep.subr.bf16.mxu0 0
      %873 = vmatpush1.bf16.msra.mxu0 0
      %874 = vmatprep.subr.bf16.mxu0 0
      %875 = vmatpush1.bf16.msra.mxu0 0
      %876 = vmatprep.subr.bf16.mxu0 0
      %877 = vmatpush1.bf16.msra.mxu0 0
      %878 = vmatprep.subr.bf16.mxu0 0
      %879 = vmatpush1.bf16.msra.mxu0 0
      %880 = vmatprep.subr.bf16.mxu0 0
      %881 = vmatpush1.bf16.msra.mxu0 0
      %882 = vmatprep.subr.bf16.mxu0 0
      %883 = vmatpush1.bf16.msra.mxu0 0
      %884 = vmatprep.subr.bf16.mxu0 0
      %885 = vmatpush1.bf16.msra.mxu0 0
      %886 = vmatprep.subr.bf16.mxu0 0
      %887 = vmatpush1.bf16.msra.mxu0 0
      %888 = vmatprep.subr.bf16.mxu0 0
      %889 = vmatpush1.bf16.msra.mxu0 0
      %890 = vmatprep.subr.bf16.mxu0 0
      %891 = vmatpush1.bf16.msra.mxu0 0
      %892 = vmatprep.subr.bf16.mxu0 0
      %893 = vmatpush1.bf16.msra.mxu0 0
      %894 = vmatprep.subr.bf16.mxu0 0
      %895 = vmatpush1.bf16.msra.mxu0 0
      %896 = vmatprep.subr.bf16.mxu0 0
      %897 = vmatpush1.bf16.msra.mxu0 0
      %898 = vmatprep.subr.bf16.mxu0 0
      %899 = vmatpush1.bf16.msra.mxu0 0
      %900 = vmatprep.subr.bf16.mxu0 0
      %901 = vmatpush1.bf16.msra.mxu0 0
      %902 = vmatprep.mubr.bf16.mxu0 0
      %903 = vmatmul.mubr.bf16.gmra.mrb[0].mxu0 %v868
      %v904 = vpop.f32.mrb[0].mxu0
      %v905 = vadd.f32 0.0, %v904
      %v906 = vpop.f32.mrb[0].mxu0
      %v907 = vpop.f32.mrb[0].mxu0
      %v908 = vadd.f32 0.0, %v907
      %v909 = vpop.f32.mrb[0].mxu0
      %910 = vdwg.mxu0
      %v911 = vadd.f32 %v864, %v905
      %v912 = vadd.f32 %v865, %v908
      %v913 = vrcp.pop %v724
      %v914 = vrcp.pop %v725
      %v915 = vmul.f32 %v779, %v913
      %v916 = vmul.f32 %v780, %v914
      %v917 = vrcp.pop %v862
      %v918 = vrcp.pop %v863
      %v919 = vmul.f32 %v911, %v917
      %v920 = vmul.f32 %v912, %v918
      %v921 = vstv %s311
      %v922 = vmul.f32 %v921, %v919
      %v923 = vmul.f32 %v921, %v920
      %v924 = vsub.f32 %v915, %v922
      %v925 = vsub.f32 %v916, %v923
      %v926 = vmul.f32 %v924, %v924
      %v927 = vmul.f32 %v925, %v925
      %vm928 = vcmask 261120
      %v929 = vsel %vm928, %v926, 0.0
      %930 = vadd.xlane.f32.xlu0 %v929
      %v931 = vpop.xlane.xlu0 %930
      %v932 = vsel %vm928, %v927, 0.0
      %933 = vadd.xlane.f32.xlu0 %v932
      %v934 = vpop.xlane.xlu0 %933
      %v935 = vrcp.pop 32.0
      %v936 = vmul.f32 %v931, %v935
      %v937 = vmul.f32 %v934, %v935
      %v938 = vadd.f32 %v936, 1e-05
      %v939 = vadd.f32 %v937, 1e-05
      %v940 = vrsqrt.pop %v938
      %v941 = vrsqrt.pop %v939
      %v942 = vmul.f32 %v924, %v940
      %v943 = vmul.f32 %v925, %v941
      %v944 = vld [vmem:[%s4] sm:$0x1]
      %v946 = vlaneseq
      %v947 = vshrl.u32 %v946, 7
      %v948 = vsub.s32 0, %v947
      %v949 = vrot.slane %v944, %v948
      %v951 = vmul.f32 %v942, %v949
      %v952 = vmul.f32 %v943, %v949
      %v953 = vmul.f32 %v951, 0.64449096
      %v954 = vmul.f32 %v952, 0.64449096
      %v955 = vpack.c.bf16 %v954, %v953
      // While loop
      $region48: #{samba_attention_forward.4} parent=39 // loop_pre_header
        _
      $region49: #{samba_attention_forward.4} parent=39 // loop_header
        %s957 = sphi 0, %s959
        %p958 = scmp.ge.s32.totalorder %s957, %s22
        %v962 = vphi -inf, %v1047
        %v963 = vphi -inf, %v1048
        %v964 = vphi 0.0, %v1069
        %v965 = vphi 0.0, %v1070
        %v966 = vphi 0.0, %v1126
        %v967 = vphi 0.0, %v1127
        %v968 = vphi -inf, %v1185
        %v969 = vphi -inf, %v1186
        %v970 = vphi 0.0, %v1207
        %v971 = vphi 0.0, %v1208
        %v972 = vphi 0.0, %v1256
        %v973 = vphi 0.0, %v1257
      $region50: #{samba_attention_forward.4} parent=39 // loop_header_branch
        %961 = sbr.rel (%p958) target = $region54
      $region51: #{samba_attention_forward.4} parent=39 // loop_body
        %s974 = smul.u32 %s957, 16
        %s975 = sshra.s32 %s974, 3
        %s976 = sand.u32 %s974, 7
        %s977 = smul.addr %s975, 4
        %s978 = scalar_lea.vmem %s294, %s977
        %v979 = vld [vmem:[%s978] sm:$0xf]
        %v980 = vld [vmem:[%s978 + $0x4] sm:$0xf]
        %s981 = smul.addr %s975, 4
        %s982 = scalar_lea.vmem %s289, %s981
        %v983 = vld [vmem:[%s982] sm:$0xf]
        %v984 = vld [vmem:[%s982 + $0x4] sm:$0xf]
        %985 = vrot.lane.b32.xlu0 %v640, 96
        %v986 = vpop.permute.xlu0 %985
        %v989 = vunpack.c.l.b16 %v983
        %v990 = vunpack.c.l.b16 %v984
        %v991 = vpack.c.b16 %v990, %v989
        %992 = vrot.lane.b32.xlu0 %v991, 96
        %v993 = vpop.permute.xlu0 %992
        %v995 = vsel %vm646, %v986, 0
        %v998 = vsel %vm646, %v993, 0
        %1000 = vmatprep.subr.bf16.mxu0 0
        %1001 = vmatpush1.bf16.xpose.msra.mxu0 %v998
        %1002 = vmatprep.subr.bf16.mxu0 0
        %1003 = vmatpush1.bf16.xpose.msra.mxu0 0
        %1004 = vmatprep.subr.bf16.mxu0 0
        %1005 = vmatpush1.bf16.xpose.msra.mxu0 0
        %1006 = vmatprep.subr.bf16.mxu0 0
        %1007 = vmatpush1.bf16.xpose.msra.mxu0 0
        %1008 = vmatprep.subr.bf16.mxu0 0
        %1009 = vmatpush1.bf16.xpose.msra.mxu0 0
        %1010 = vmatprep.subr.bf16.mxu0 0
        %1011 = vmatpush1.bf16.xpose.msra.mxu0 0
        %1012 = vmatprep.subr.bf16.mxu0 0
        %1013 = vmatpush1.bf16.xpose.msra.mxu0 0
        %1014 = vmatprep.subr.bf16.mxu0 0
        %1015 = vmatpush1.bf16.xpose.msra.mxu0 0
        %1016 = vmatprep.subr.bf16.mxu0 0
        %1017 = vmatpush1.bf16.xpose.msra.mxu0 0
        %1018 = vmatprep.subr.bf16.mxu0 0
        %1019 = vmatpush1.bf16.xpose.msra.mxu0 0
        %1020 = vmatprep.subr.bf16.mxu0 0
        %1021 = vmatpush1.bf16.xpose.msra.mxu0 0
        %1022 = vmatprep.subr.bf16.mxu0 0
        %1023 = vmatpush1.bf16.xpose.msra.mxu0 0
        %1024 = vmatprep.subr.bf16.mxu0 0
        %1025 = vmatpush1.bf16.xpose.msra.mxu0 0
        %1026 = vmatprep.subr.bf16.mxu0 0
        %1027 = vmatpush1.bf16.xpose.msra.mxu0 0
        %1028 = vmatprep.subr.bf16.mxu0 0
        %1029 = vmatpush1.bf16.xpose.msra.mxu0 0
        %1030 = vmatprep.subr.bf16.mxu0 0
        %1031 = vmatpush1.bf16.xpose.msra.mxu0 0
        %1032 = vmatprep.mubr.bf16.mxu0 0
        %1033 = vmatmul.mubr.bf16.gmra.mrb[0].mxu0 %v995
        %v1034 = vpop.f32.mrb[0].mxu0
        %v1035 = vadd.f32 0.0, %v1034
        %v1036 = vpop.f32.mrb[0].mxu0
        %v1037 = vpop.f32.mrb[0].mxu0
        %v1038 = vadd.f32 0.0, %v1037
        %v1039 = vpop.f32.mrb[0].mxu0
        %1040 = vdwg.mxu0
        %v1041 = vsel %vm646, %v1035, -inf
        %1042 = vmax.xlane.f32.xlu0 %v1041
        %v1043 = vpop.xlane.xlu0 %1042
        %v1044 = vsel %vm646, %v1038, -inf
        %1045 = vmax.xlane.f32.xlu0 %v1044
        %v1046 = vpop.xlane.xlu0 %1045
        %v1047 = vmax.f32 %v962, %v1043
        %v1048 = vmax.f32 %v963, %v1046
        %v1049 = vsub.f32 %v962, %v1047
        %v1050 = vsub.f32 %v963, %v1048
        %v1051 = vmul.f32 %v1049, 1.442695
        %v1052 = vpow.pop %v1051
        %v1053 = vmul.f32 %v1050, 1.442695
        %v1054 = vpow.pop %v1053
        %v1055 = vsub.f32 %v1035, %v1047
        %v1056 = vsub.f32 %v1038, %v1048
        %v1057 = vmul.f32 %v1055, 1.442695
        %v1058 = vpow.pop %v1057
        %v1059 = vmul.f32 %v1056, 1.442695
        %v1060 = vpow.pop %v1059
        %v1061 = vmul.f32 %v1052, %v964
        %v1062 = vmul.f32 %v1054, %v965
        %v1063 = vsel %vm646, %v1058, 0.0
        %1064 = vadd.xlane.f32.xlu0 %v1063
        %v1065 = vpop.xlane.xlu0 %1064
        %v1066 = vsel %vm646, %v1060, 0.0
        %1067 = vadd.xlane.f32.xlu0 %v1066
        %v1068 = vpop.xlane.xlu0 %1067
        %v1069 = vadd.f32 %v1061, %v1065
        %v1070 = vadd.f32 %v1062, %v1068
        %v1071 = vmul.f32 %v1052, %v966
        %v1072 = vmul.f32 %v1054, %v967
        %v1073 = vpack.c.bf16 %v1060, %v1058
        %v1076 = vunpack.c.l.b16 %v979
        %v1077 = vunpack.c.l.b16 %v980
        %v1078 = vpack.c.b16 %v1077, %v1076
        %1079 = vrot.lane.b32.xlu0 %v1078, 96
        %v1080 = vpop.permute.xlu0 %1079
        %v1083 = vsel %vm646, %v1073, 0
        %1085 = vmatprep.subr.bf16.mxu0 0
        %1086 = vmatpush1.bf16.msra.mxu0 %v1080
        %1087 = vmatprep.subr.bf16.mxu0 0
        %1088 = vmatpush1.bf16.msra.mxu0 0
        %1089 = vmatprep.subr.bf16.mxu0 0
        %1090 = vmatpush1.bf16.msra.mxu0 0
        %1091 = vmatprep.subr.bf16.mxu0 0
        %1092 = vmatpush1.bf16.msra.mxu0 0
        %1093 = vmatprep.subr.bf16.mxu0 0
        %1094 = vmatpush1.bf16.msra.mxu0 0
        %1095 = vmatprep.subr.bf16.mxu0 0
        %1096 = vmatpush1.bf16.msra.mxu0 0
        %1097 = vmatprep.subr.bf16.mxu0 0
        %1098 = vmatpush1.bf16.msra.mxu0 0
        %1099 = vmatprep.subr.bf16.mxu0 0
        %1100 = vmatpush1.bf16.msra.mxu0 0
        %1101 = vmatprep.subr.bf16.mxu0 0
        %1102 = vmatpush1.bf16.msra.mxu0 0
        %1103 = vmatprep.subr.bf16.mxu0 0
        %1104 = vmatpush1.bf16.msra.mxu0 0
        %1105 = vmatprep.subr.bf16.mxu0 0
        %1106 = vmatpush1.bf16.msra.mxu0 0
        %1107 = vmatprep.subr.bf16.mxu0 0
        %1108 = vmatpush1.bf16.msra.mxu0 0
        %1109 = vmatprep.subr.bf16.mxu0 0
        %1110 = vmatpush1.bf16.msra.mxu0 0
        %1111 = vmatprep.subr.bf16.mxu0 0
        %1112 = vmatpush1.bf16.msra.mxu0 0
        %1113 = vmatprep.subr.bf16.mxu0 0
        %1114 = vmatpush1.bf16.msra.mxu0 0
        %1115 = vmatprep.subr.bf16.mxu0 0
        %1116 = vmatpush1.bf16.msra.mxu0 0
        %1117 = vmatprep.mubr.bf16.mxu0 0
        %1118 = vmatmul.mubr.bf16.gmra.mrb[0].mxu0 %v1083
        %v1119 = vpop.f32.mrb[0].mxu0
        %v1120 = vadd.f32 0.0, %v1119
        %v1121 = vpop.f32.mrb[0].mxu0
        %v1122 = vpop.f32.mrb[0].mxu0
        %v1123 = vadd.f32 0.0, %v1122
        %v1124 = vpop.f32.mrb[0].mxu0
        %1125 = vdwg.mxu0
        %v1126 = vadd.f32 %v1071, %v1120
        %v1127 = vadd.f32 %v1072, %v1123
        %1128 = vrot.lane.b32.xlu0 %v640, 80
        %v1129 = vpop.permute.xlu0 %1128
        %1130 = vrot.lane.b32.xlu0 %v991, 80
        %v1131 = vpop.permute.xlu0 %1130
        %v1133 = vsel %vm646, %v1129, 0
        %v1136 = vsel %vm646, %v1131, 0
        %1138 = vmatprep.subr.bf16.mxu0 0
        %1139 = vmatpush1.bf16.xpose.msra.mxu0 %v1136
        %1140 = vmatprep.subr.bf16.mxu0 0
        %1141 = vmatpush1.bf16.xpose.msra.mxu0 0
        %1142 = vmatprep.subr.bf16.mxu0 0
        %1143 = vmatpush1.bf16.xpose.msra.mxu0 0
        %1144 = vmatprep.subr.bf16.mxu0 0
        %1145 = vmatpush1.bf16.xpose.msra.mxu0 0
        %1146 = vmatprep.subr.bf16.mxu0 0
        %1147 = vmatpush1.bf16.xpose.msra.mxu0 0
        %1148 = vmatprep.subr.bf16.mxu0 0
        %1149 = vmatpush1.bf16.xpose.msra.mxu0 0
        %1150 = vmatprep.subr.bf16.mxu0 0
        %1151 = vmatpush1.bf16.xpose.msra.mxu0 0
        %1152 = vmatprep.subr.bf16.mxu0 0
        %1153 = vmatpush1.bf16.xpose.msra.mxu0 0
        %1154 = vmatprep.subr.bf16.mxu0 0
        %1155 = vmatpush1.bf16.xpose.msra.mxu0 0
        %1156 = vmatprep.subr.bf16.mxu0 0
        %1157 = vmatpush1.bf16.xpose.msra.mxu0 0
        %1158 = vmatprep.subr.bf16.mxu0 0
        %1159 = vmatpush1.bf16.xpose.msra.mxu0 0
        %1160 = vmatprep.subr.bf16.mxu0 0
        %1161 = vmatpush1.bf16.xpose.msra.mxu0 0
        %1162 = vmatprep.subr.bf16.mxu0 0
        %1163 = vmatpush1.bf16.xpose.msra.mxu0 0
        %1164 = vmatprep.subr.bf16.mxu0 0
        %1165 = vmatpush1.bf16.xpose.msra.mxu0 0
        %1166 = vmatprep.subr.bf16.mxu0 0
        %1167 = vmatpush1.bf16.xpose.msra.mxu0 0
        %1168 = vmatprep.subr.bf16.mxu0 0
        %1169 = vmatpush1.bf16.xpose.msra.mxu0 0
        %1170 = vmatprep.mubr.bf16.mxu0 0
        %1171 = vmatmul.mubr.bf16.gmra.mrb[0].mxu0 %v1133
        %v1172 = vpop.f32.mrb[0].mxu0
        %v1173 = vadd.f32 0.0, %v1172
        %v1174 = vpop.f32.mrb[0].mxu0
        %v1175 = vpop.f32.mrb[0].mxu0
        %v1176 = vadd.f32 0.0, %v1175
        %v1177 = vpop.f32.mrb[0].mxu0
        %1178 = vdwg.mxu0
        %v1179 = vsel %vm646, %v1173, -inf
        %1180 = vmax.xlane.f32.xlu0 %v1179
        %v1181 = vpop.xlane.xlu0 %1180
        %v1182 = vsel %vm646, %v1176, -inf
        %1183 = vmax.xlane.f32.xlu0 %v1182
        %v1184 = vpop.xlane.xlu0 %1183
        %v1185 = vmax.f32 %v968, %v1181
        %v1186 = vmax.f32 %v969, %v1184
        %v1187 = vsub.f32 %v968, %v1185
        %v1188 = vsub.f32 %v969, %v1186
        %v1189 = vmul.f32 %v1187, 1.442695
        %v1190 = vpow.pop %v1189
        %v1191 = vmul.f32 %v1188, 1.442695
        %v1192 = vpow.pop %v1191
        %v1193 = vsub.f32 %v1173, %v1185
        %v1194 = vsub.f32 %v1176, %v1186
        %v1195 = vmul.f32 %v1193, 1.442695
        %v1196 = vpow.pop %v1195
        %v1197 = vmul.f32 %v1194, 1.442695
        %v1198 = vpow.pop %v1197
        %v1199 = vmul.f32 %v1190, %v970
        %v1200 = vmul.f32 %v1192, %v971
        %v1201 = vsel %vm646, %v1196, 0.0
        %1202 = vadd.xlane.f32.xlu0 %v1201
        %v1203 = vpop.xlane.xlu0 %1202
        %v1204 = vsel %vm646, %v1198, 0.0
        %1205 = vadd.xlane.f32.xlu0 %v1204
        %v1206 = vpop.xlane.xlu0 %1205
        %v1207 = vadd.f32 %v1199, %v1203
        %v1208 = vadd.f32 %v1200, %v1206
        %v1209 = vmul.f32 %v1190, %v972
        %v1210 = vmul.f32 %v1192, %v973
        %v1211 = vpack.c.bf16 %v1198, %v1196
        %v1213 = vsel %vm646, %v1211, 0
        %1215 = vmatprep.subr.bf16.mxu0 0
        %1216 = vmatpush1.bf16.msra.mxu0 %v1080
        %1217 = vmatprep.subr.bf16.mxu0 0
        %1218 = vmatpush1.bf16.msra.mxu0 0
        %1219 = vmatprep.subr.bf16.mxu0 0
        %1220 = vmatpush1.bf16.msra.mxu0 0
        %1221 = vmatprep.subr.bf16.mxu0 0
        %1222 = vmatpush1.bf16.msra.mxu0 0
        %1223 = vmatprep.subr.bf16.mxu0 0
        %1224 = vmatpush1.bf16.msra.mxu0 0
        %1225 = vmatprep.subr.bf16.mxu0 0
        %1226 = vmatpush1.bf16.msra.mxu0 0
        %1227 = vmatprep.subr.bf16.mxu0 0
        %1228 = vmatpush1.bf16.msra.mxu0 0
        %1229 = vmatprep.subr.bf16.mxu0 0
        %1230 = vmatpush1.bf16.msra.mxu0 0
        %1231 = vmatprep.subr.bf16.mxu0 0
        %1232 = vmatpush1.bf16.msra.mxu0 0
        %1233 = vmatprep.subr.bf16.mxu0 0
        %1234 = vmatpush1.bf16.msra.mxu0 0
        %1235 = vmatprep.subr.bf16.mxu0 0
        %1236 = vmatpush1.bf16.msra.mxu0 0
        %1237 = vmatprep.subr.bf16.mxu0 0
        %1238 = vmatpush1.bf16.msra.mxu0 0
        %1239 = vmatprep.subr.bf16.mxu0 0
        %1240 = vmatpush1.bf16.msra.mxu0 0
        %1241 = vmatprep.subr.bf16.mxu0 0
        %1242 = vmatpush1.bf16.msra.mxu0 0
        %1243 = vmatprep.subr.bf16.mxu0 0
        %1244 = vmatpush1.bf16.msra.mxu0 0
        %1245 = vmatprep.subr.bf16.mxu0 0
        %1246 = vmatpush1.bf16.msra.mxu0 0
        %1247 = vmatprep.mubr.bf16.mxu0 0
        %1248 = vmatmul.mubr.bf16.gmra.mrb[0].mxu0 %v1213
        %v1249 = vpop.f32.mrb[0].mxu0
        %v1250 = vadd.f32 0.0, %v1249
        %v1251 = vpop.f32.mrb[0].mxu0
        %v1252 = vpop.f32.mrb[0].mxu0
        %v1253 = vadd.f32 0.0, %v1252
        %v1254 = vpop.f32.mrb[0].mxu0
        %1255 = vdwg.mxu0
        %v1256 = vadd.f32 %v1209, %v1250
        %v1257 = vadd.f32 %v1210, %v1253
      $region52: #{samba_attention_forward.4} parent=39 // loop_footer
        %s959 = sadd.s32 %s957, 1
      $region53: #{samba_attention_forward.4} parent=39 // loop_footer_branch
        %956 = sbr.rel target = $region49
      $region54: #{samba_attention_forward.4} parent=39 // loop_exit
        _
      %1258 = vrot.lane.b32.xlu0 %v640, 96
      %v1259 = vpop.permute.xlu0 %1258
      %1260 = vrot.lane.b32.xlu0 %v645, 96
      %v1261 = vpop.permute.xlu0 %1260
      %v1263 = vsel %vm646, %v1259, 0
      %v1266 = vsel %vm646, %v1261, 0
      %1268 = vmatprep.subr.bf16.mxu0 0
      %1269 = vmatpush1.bf16.xpose.msra.mxu0 %v1266
      %1270 = vmatprep.subr.bf16.mxu0 0
      %1271 = vmatpush1.bf16.xpose.msra.mxu0 0
      %1272 = vmatprep.subr.bf16.mxu0 0
      %1273 = vmatpush1.bf16.xpose.msra.mxu0 0
      %1274 = vmatprep.subr.bf16.mxu0 0
      %1275 = vmatpush1.bf16.xpose.msra.mxu0 0
      %1276 = vmatprep.subr.bf16.mxu0 0
      %1277 = vmatpush1.bf16.xpose.msra.mxu0 0
      %1278 = vmatprep.subr.bf16.mxu0 0
      %1279 = vmatpush1.bf16.xpose.msra.mxu0 0
      %1280 = vmatprep.subr.bf16.mxu0 0
      %1281 = vmatpush1.bf16.xpose.msra.mxu0 0
      %1282 = vmatprep.subr.bf16.mxu0 0
      %1283 = vmatpush1.bf16.xpose.msra.mxu0 0
      %1284 = vmatprep.subr.bf16.mxu0 0
      %1285 = vmatpush1.bf16.xpose.msra.mxu0 0
      %1286 = vmatprep.subr.bf16.mxu0 0
      %1287 = vmatpush1.bf16.xpose.msra.mxu0 0
      %1288 = vmatprep.subr.bf16.mxu0 0
      %1289 = vmatpush1.bf16.xpose.msra.mxu0 0
      %1290 = vmatprep.subr.bf16.mxu0 0
      %1291 = vmatpush1.bf16.xpose.msra.mxu0 0
      %1292 = vmatprep.subr.bf16.mxu0 0
      %1293 = vmatpush1.bf16.xpose.msra.mxu0 0
      %1294 = vmatprep.subr.bf16.mxu0 0
      %1295 = vmatpush1.bf16.xpose.msra.mxu0 0
      %1296 = vmatprep.subr.bf16.mxu0 0
      %1297 = vmatpush1.bf16.xpose.msra.mxu0 0
      %1298 = vmatprep.subr.bf16.mxu0 0
      %1299 = vmatpush1.bf16.xpose.msra.mxu0 0
      %1300 = vmatprep.mubr.bf16.mxu0 0
      %1301 = vmatmul.mubr.bf16.gmra.mrb[0].mxu0 %v1263
      %v1302 = vpop.f32.mrb[0].mxu0
      %v1303 = vadd.f32 0.0, %v1302
      %v1304 = vpop.f32.mrb[0].mxu0
      %v1305 = vpop.f32.mrb[0].mxu0
      %v1306 = vadd.f32 0.0, %v1305
      %v1307 = vpop.f32.mrb[0].mxu0
      %1308 = vdwg.mxu0
      %v1309 = vsel %vm322, %v1303, -inf
      %v1310 = vsel %vm323, %v1306, -inf
      %v1311 = vsel %vm646, %v1309, -inf
      %1312 = vmax.xlane.f32.xlu0 %v1311
      %v1313 = vpop.xlane.xlu0 %1312
      %v1314 = vsel %vm646, %v1310, -inf
      %1315 = vmax.xlane.f32.xlu0 %v1314
      %v1316 = vpop.xlane.xlu0 %1315
      %v1317 = vmax.f32 %v962, %v1313
      %v1318 = vmax.f32 %v963, %v1316
      %v1319 = vsub.f32 %v962, %v1317
      %v1320 = vsub.f32 %v963, %v1318
      %v1321 = vmul.f32 %v1319, 1.442695
      %v1322 = vpow.pop %v1321
      %v1323 = vmul.f32 %v1320, 1.442695
      %v1324 = vpow.pop %v1323
      %v1325 = vsub.f32 %v1309, %v1317
      %v1326 = vsub.f32 %v1310, %v1318
      %v1327 = vmul.f32 %v1325, 1.442695
      %v1328 = vpow.pop %v1327
      %v1329 = vmul.f32 %v1326, 1.442695
      %v1330 = vpow.pop %v1329
      %v1331 = vmul.f32 %v1322, %v964
      %v1332 = vmul.f32 %v1324, %v965
      %v1333 = vsel %vm646, %v1328, 0.0
      %1334 = vadd.xlane.f32.xlu0 %v1333
      %v1335 = vpop.xlane.xlu0 %1334
      %v1336 = vsel %vm646, %v1330, 0.0
      %1337 = vadd.xlane.f32.xlu0 %v1336
      %v1338 = vpop.xlane.xlu0 %1337
      %v1339 = vadd.f32 %v1331, %v1335
      %v1340 = vadd.f32 %v1332, %v1338
      %v1341 = vmul.f32 %v1322, %v966
      %v1342 = vmul.f32 %v1324, %v967
      %v1343 = vpack.c.bf16 %v1330, %v1328
      %1344 = vrot.lane.b32.xlu0 %v733, 96
      %v1345 = vpop.permute.xlu0 %1344
      %v1348 = vsel %vm646, %v1343, 0
      %1350 = vmatprep.subr.bf16.mxu0 0
      %1351 = vmatpush1.bf16.msra.mxu0 %v1345
      %1352 = vmatprep.subr.bf16.mxu0 0
      %1353 = vmatpush1.bf16.msra.mxu0 0
      %1354 = vmatprep.subr.bf16.mxu0 0
      %1355 = vmatpush1.bf16.msra.mxu0 0
      %1356 = vmatprep.subr.bf16.mxu0 0
      %1357 = vmatpush1.bf16.msra.mxu0 0
      %1358 = vmatprep.subr.bf16.mxu0 0
      %1359 = vmatpush1.bf16.msra.mxu0 0
      %1360 = vmatprep.subr.bf16.mxu0 0
      %1361 = vmatpush1.bf16.msra.mxu0 0
      %1362 = vmatprep.subr.bf16.mxu0 0
      %1363 = vmatpush1.bf16.msra.mxu0 0
      %1364 = vmatprep.subr.bf16.mxu0 0
      %1365 = vmatpush1.bf16.msra.mxu0 0
      %1366 = vmatprep.subr.bf16.mxu0 0
      %1367 = vmatpush1.bf16.msra.mxu0 0
      %1368 = vmatprep.subr.bf16.mxu0 0
      %1369 = vmatpush1.bf16.msra.mxu0 0
      %1370 = vmatprep.subr.bf16.mxu0 0
      %1371 = vmatpush1.bf16.msra.mxu0 0
      %1372 = vmatprep.subr.bf16.mxu0 0
      %1373 = vmatpush1.bf16.msra.mxu0 0
      %1374 = vmatprep.subr.bf16.mxu0 0
      %1375 = vmatpush1.bf16.msra.mxu0 0
      %1376 = vmatprep.subr.bf16.mxu0 0
      %1377 = vmatpush1.bf16.msra.mxu0 0
      %1378 = vmatprep.subr.bf16.mxu0 0
      %1379 = vmatpush1.bf16.msra.mxu0 0
      %1380 = vmatprep.subr.bf16.mxu0 0
      %1381 = vmatpush1.bf16.msra.mxu0 0
      %1382 = vmatprep.mubr.bf16.mxu0 0
      %1383 = vmatmul.mubr.bf16.gmra.mrb[0].mxu0 %v1348
      %v1384 = vpop.f32.mrb[0].mxu0
      %v1385 = vadd.f32 0.0, %v1384
      %v1386 = vpop.f32.mrb[0].mxu0
      %v1387 = vpop.f32.mrb[0].mxu0
      %v1388 = vadd.f32 0.0, %v1387
      %v1389 = vpop.f32.mrb[0].mxu0
      %1390 = vdwg.mxu0
      %v1391 = vadd.f32 %v1341, %v1385
      %v1392 = vadd.f32 %v1342, %v1388
      %1393 = vrot.lane.b32.xlu0 %v640, 80
      %v1394 = vpop.permute.xlu0 %1393
      %1395 = vrot.lane.b32.xlu0 %v645, 80
      %v1396 = vpop.permute.xlu0 %1395
      %v1398 = vsel %vm646, %v1394, 0
      %v1401 = vsel %vm646, %v1396, 0
      %1403 = vmatprep.subr.bf16.mxu0 0
      %1404 = vmatpush1.bf16.xpose.msra.mxu0 %v1401
      %1405 = vmatprep.subr.bf16.mxu0 0
      %1406 = vmatpush1.bf16.xpose.msra.mxu0 0
      %1407 = vmatprep.subr.bf16.mxu0 0
      %1408 = vmatpush1.bf16.xpose.msra.mxu0 0
      %1409 = vmatprep.subr.bf16.mxu0 0
      %1410 = vmatpush1.bf16.xpose.msra.mxu0 0
      %1411 = vmatprep.subr.bf16.mxu0 0
      %1412 = vmatpush1.bf16.xpose.msra.mxu0 0
      %1413 = vmatprep.subr.bf16.mxu0 0
      %1414 = vmatpush1.bf16.xpose.msra.mxu0 0
      %1415 = vmatprep.subr.bf16.mxu0 0
      %1416 = vmatpush1.bf16.xpose.msra.mxu0 0
      %1417 = vmatprep.subr.bf16.mxu0 0
      %1418 = vmatpush1.bf16.xpose.msra.mxu0 0
      %1419 = vmatprep.subr.bf16.mxu0 0
      %1420 = vmatpush1.bf16.xpose.msra.mxu0 0
      %1421 = vmatprep.subr.bf16.mxu0 0
      %1422 = vmatpush1.bf16.xpose.msra.mxu0 0
      %1423 = vmatprep.subr.bf16.mxu0 0
      %1424 = vmatpush1.bf16.xpose.msra.mxu0 0
      %1425 = vmatprep.subr.bf16.mxu0 0
      %1426 = vmatpush1.bf16.xpose.msra.mxu0 0
      %1427 = vmatprep.subr.bf16.mxu0 0
      %1428 = vmatpush1.bf16.xpose.msra.mxu0 0
      %1429 = vmatprep.subr.bf16.mxu0 0
      %1430 = vmatpush1.bf16.xpose.msra.mxu0 0
      %1431 = vmatprep.subr.bf16.mxu0 0
      %1432 = vmatpush1.bf16.xpose.msra.mxu0 0
      %1433 = vmatprep.subr.bf16.mxu0 0
      %1434 = vmatpush1.bf16.xpose.msra.mxu0 0
      %1435 = vmatprep.mubr.bf16.mxu0 0
      %1436 = vmatmul.mubr.bf16.gmra.mrb[0].mxu0 %v1398
      %v1437 = vpop.f32.mrb[0].mxu0
      %v1438 = vadd.f32 0.0, %v1437
      %v1439 = vpop.f32.mrb[0].mxu0
      %v1440 = vpop.f32.mrb[0].mxu0
      %v1441 = vadd.f32 0.0, %v1440
      %v1442 = vpop.f32.mrb[0].mxu0
      %1443 = vdwg.mxu0
      %v1444 = vsel %vm322, %v1438, -inf
      %v1445 = vsel %vm323, %v1441, -inf
      %v1446 = vsel %vm646, %v1444, -inf
      %1447 = vmax.xlane.f32.xlu0 %v1446
      %v1448 = vpop.xlane.xlu0 %1447
      %v1449 = vsel %vm646, %v1445, -inf
      %1450 = vmax.xlane.f32.xlu0 %v1449
      %v1451 = vpop.xlane.xlu0 %1450
      %v1452 = vmax.f32 %v968, %v1448
      %v1453 = vmax.f32 %v969, %v1451
      %v1454 = vsub.f32 %v968, %v1452
      %v1455 = vsub.f32 %v969, %v1453
      %v1456 = vmul.f32 %v1454, 1.442695
      %v1457 = vpow.pop %v1456
      %v1458 = vmul.f32 %v1455, 1.442695
      %v1459 = vpow.pop %v1458
      %v1460 = vsub.f32 %v1444, %v1452
      %v1461 = vsub.f32 %v1445, %v1453
      %v1462 = vmul.f32 %v1460, 1.442695
      %v1463 = vpow.pop %v1462
      %v1464 = vmul.f32 %v1461, 1.442695
      %v1465 = vpow.pop %v1464
      %v1466 = vmul.f32 %v1457, %v970
      %v1467 = vmul.f32 %v1459, %v971
      %v1468 = vsel %vm646, %v1463, 0.0
      %1469 = vadd.xlane.f32.xlu0 %v1468
      %v1470 = vpop.xlane.xlu0 %1469
      %v1471 = vsel %vm646, %v1465, 0.0
      %1472 = vadd.xlane.f32.xlu0 %v1471
      %v1473 = vpop.xlane.xlu0 %1472
      %v1474 = vadd.f32 %v1466, %v1470
      %v1475 = vadd.f32 %v1467, %v1473
      %v1476 = vmul.f32 %v1457, %v972
      %v1477 = vmul.f32 %v1459, %v973
      %v1478 = vpack.c.bf16 %v1465, %v1463
      %v1480 = vsel %vm646, %v1478, 0
      %1482 = vmatprep.subr.bf16.mxu0 0
      %1483 = vmatpush1.bf16.msra.mxu0 %v1345
      %1484 = vmatprep.subr.bf16.mxu0 0
      %1485 = vmatpush1.bf16.msra.mxu0 0
      %1486 = vmatprep.subr.bf16.mxu0 0
      %1487 = vmatpush1.bf16.msra.mxu0 0
      %1488 = vmatprep.subr.bf16.mxu0 0
      %1489 = vmatpush1.bf16.msra.mxu0 0
      %1490 = vmatprep.subr.bf16.mxu0 0
      %1491 = vmatpush1.bf16.msra.mxu0 0
      %1492 = vmatprep.subr.bf16.mxu0 0
      %1493 = vmatpush1.bf16.msra.mxu0 0
      %1494 = vmatprep.subr.bf16.mxu0 0
      %1495 = vmatpush1.bf16.msra.mxu0 0
      %1496 = vmatprep.subr.bf16.mxu0 0
      %1497 = vmatpush1.bf16.msra.mxu0 0
      %1498 = vmatprep.subr.bf16.mxu0 0
      %1499 = vmatpush1.bf16.msra.mxu0 0
      %1500 = vmatprep.subr.bf16.mxu0 0
      %1501 = vmatpush1.bf16.msra.mxu0 0
      %1502 = vmatprep.subr.bf16.mxu0 0
      %1503 = vmatpush1.bf16.msra.mxu0 0
      %1504 = vmatprep.subr.bf16.mxu0 0
      %1505 = vmatpush1.bf16.msra.mxu0 0
      %1506 = vmatprep.subr.bf16.mxu0 0
      %1507 = vmatpush1.bf16.msra.mxu0 0
      %1508 = vmatprep.subr.bf16.mxu0 0
      %1509 = vmatpush1.bf16.msra.mxu0 0
      %1510 = vmatprep.subr.bf16.mxu0 0
      %1511 = vmatpush1.bf16.msra.mxu0 0
      %1512 = vmatprep.subr.bf16.mxu0 0
      %1513 = vmatpush1.bf16.msra.mxu0 0
      %1514 = vmatprep.mubr.bf16.mxu0 0
      %1515 = vmatmul.mubr.bf16.gmra.mrb[0].mxu0 %v1480
      %v1516 = vpop.f32.mrb[0].mxu0
      %v1517 = vadd.f32 0.0, %v1516
      %v1518 = vpop.f32.mrb[0].mxu0
      %v1519 = vpop.f32.mrb[0].mxu0
      %v1520 = vadd.f32 0.0, %v1519
      %v1521 = vpop.f32.mrb[0].mxu0
      %1522 = vdwg.mxu0
      %v1523 = vadd.f32 %v1476, %v1517
      %v1524 = vadd.f32 %v1477, %v1520
      %v1525 = vrcp.pop %v1339
      %v1526 = vrcp.pop %v1340
      %v1527 = vmul.f32 %v1391, %v1525
      %v1528 = vmul.f32 %v1392, %v1526
      %v1529 = vrcp.pop %v1474
      %v1530 = vrcp.pop %v1475
      %v1531 = vmul.f32 %v1523, %v1529
      %v1532 = vmul.f32 %v1524, %v1530
      %v1533 = vmul.f32 %v921, %v1531
      %v1534 = vmul.f32 %v921, %v1532
      %v1535 = vsub.f32 %v1527, %v1533
      %v1536 = vsub.f32 %v1528, %v1534
      %v1537 = vmul.f32 %v1535, %v1535
      %v1538 = vmul.f32 %v1536, %v1536
      %v1539 = vsel %vm928, %v1537, 0.0
      %1540 = vadd.xlane.f32.xlu0 %v1539
      %v1541 = vpop.xlane.xlu0 %1540
      %v1542 = vsel %vm928, %v1538, 0.0
      %1543 = vadd.xlane.f32.xlu0 %v1542
      %v1544 = vpop.xlane.xlu0 %1543
      %v1545 = vmul.f32 %v1541, %v935
      %v1546 = vmul.f32 %v1544, %v935
      %v1547 = vadd.f32 %v1545, 1e-05
      %v1548 = vadd.f32 %v1546, 1e-05
      %v1549 = vrsqrt.pop %v1547
      %v1550 = vrsqrt.pop %v1548
      %v1551 = vmul.f32 %v1535, %v1549
      %v1552 = vmul.f32 %v1536, %v1550
      %v1553 = vmul.f32 %v1551, %v949
      %v1554 = vmul.f32 %v1552, %v949
      %v1555 = vmul.f32 %v1553, 0.64449096
      %v1556 = vmul.f32 %v1554, 0.64449096
      %v1557 = vpack.c.bf16 %v1556, %v1555
      %1559 = vrot.lane.b32.xlu0 %v1557, 32
      %v1560 = vpop.permute.xlu0 %1559
      %v1563 = vsel %vm928, %v955, %v1560
      %v1565 = vunpack.c.l.b16 %v1563
      %v1566 = vunpack.c.h.b16 %v1563
      %v1567 = vpack.c.b16 %v1565, %v1565
      %v1568 = vpack.c.b16 %v1566, %v1566
      %vm1571 = vcmask 519168
      %1572 = vst.msk [vmem:[%s303] sm:$0xf] %vm1571, %v1567
      %1573 = vst.msk [vmem:[%s303 + $0x4] sm:$0xf] %vm1571, %v1568
      %s1574 = smul.u32 2, %s22
      %p1575 = scmp.lt.s32.totalorder %s21, 1
      %s1576 = scalar_select %p1575, %s21, 1
      %p1577 = scmp.lt.s32.totalorder %s1574, 1
      %s1578 = scalar_select %p1577, %s1574, 1
      %s1579 = smul.addr %s1576, 2
      %s1580 = sadd.s32 %s1578, %s1579
      %s1581 = smul.addr %s1580, 4
      %s1582 = scalar_lea.vmem %s5, %s1581
      // Predicated region
      $region55: #{samba_attention_forward.4} parent=39 // pred_check
        %p1583 = pneg %p171
      $region56: #{samba_attention_forward.4} parent=39 // pred_check_branch
        %1585 = sbr.rel (%p1583) target = $region58
      $region57: #{samba_attention_forward.4} parent=39 // pred_region
        %s1586 = smul.u32 2, %s22
      $region58: #{samba_attention_forward.4} parent=39 // pred_fallthru
        _
    $region40: #{samba_attention_forward.4} parent=5 // pred_fallthru
      _
    %p1587 = scmp.le.s32.totalorder 2, %s12
    // Predicated region
    $region59: #{samba_attention_forward.4} parent=5 // pred_check
      %p1588 = pneg %p1587
    $region60: #{samba_attention_forward.4} parent=5 // pred_check_branch
      %1590 = sbr.rel (%p1588) target = $region62
    $region61: #{samba_attention_forward.4} parent=5 // pred_region
      %s1591 = ssub.s32 %s12, 2
      // Predicated region
      $region63: #{samba_attention_forward.4} parent=61 // pred_check
        %p1592 = pneg %p177
      $region64: #{samba_attention_forward.4} parent=61 // pred_check_branch
        %1594 = sbr.rel (%p1592) target = $region66
      $region65: #{samba_attention_forward.4} parent=61 // pred_region
        %s1595 = smul.u32 2, %s24
        %p1596 = scmp.lt.s32.totalorder %s23, 1
        %s1597 = scalar_select %p1596, %s23, 1
        %p1598 = scmp.lt.s32.totalorder %s1595, 1
        %s1599 = scalar_select %p1598, %s1595, 1
        %s1600 = smul.addr %s1597, 2
        %s1601 = sadd.s32 %s1599, %s1600
        %s1602 = smul.addr %s1601, 4
        %s1603 = scalar_lea.vmem %s5, %s1602
      $region66: #{samba_attention_forward.4} parent=61 // pred_fallthru
        _
    $region62: #{samba_attention_forward.4} parent=5 // pred_fallthru
      _
  $region6: #{samba_attention_forward.4} parent=0 // loop_footer
    %s16 = sadd.s32 1, %s12
  $region7: #{samba_attention_forward.4} parent=0 // loop_footer_branch
    %11 = sbr.rel target = $region3
  $region8: #{samba_attention_forward.4} parent=0 // loop_exit
    _

</llo_original>
